<compile_context>
chip_gen: v5e
topology: v5e:2x2
jax: 0.10.0
libtpu: 0.0.40
codegen_flags: <defaults>
</compile_context>

<pallas_src>
import functools
import math

import numpy as np
import jax
import jax.numpy as jnp
from jax.experimental import pallas as pl
from jax.experimental.pallas import tpu as pltpu


# ------------------------------ small helpers -------------------------------

def _sublane_align(dtype):
    # f32 -> 8, bf16 -> 16, int8/fp8 -> 32 (sub-32-bit dtypes pack along sublanes)
    return 8 * (4 // np.dtype(dtype).itemsize)


def _pick_tile(dim, target, align):
    """Largest tile <= target that divides dim and is a multiple of `align`,
    else the full dim (block == full array dim is always legal)."""
    if dim <= target:
        return dim
    t = (target // align) * align
    while t >= align:
        if dim % t == 0:
            return t
        t -= align
    return dim


def _vmem_limit_bytes(block_entries, live_bytes=0):
    """Explicit scoped-VMEM budget from actual tile sizes (+ headroom), capped
    at 64 MiB so the same budget is valid on v7x (64 MiB physical VMEM)."""
    blocks = sum(nbuf * math.prod(shape) * np.dtype(dtype).itemsize
                 for shape, dtype, nbuf in block_entries)
    est = blocks + live_bytes + (4 << 20)           # headroom for vregs/internal
    return int(min(max(est, 16 << 20), 64 << 20))


# ----------------------------- attention kernel -----------------------------

def _attn_kernel(xq_ref, xkv_ref, wq_ref, wk_ref, wv_ref,
                 bq_ref, bk_ref, bv_ref, wo_ref, bo_ref,
                 o_ref, a_ref, acc_ref):
    # Grid = (B, L//tq, H); head axis is innermost ("arbitrary") reduction axis.
    h = pl.program_id(2)

    @pl.when(h == 0)
    def _():
        acc_ref[...] = jnp.zeros_like(acc_ref)

    xq = xq_ref[0]                              # (tq, D) bf16
    xkv = xkv_ref[0]                            # (L,  D) bf16
    E = wq_ref.shape[-1]
    scale = 1.0 / float(E) ** 0.5

    # Fused per-head Q/K/V projections: bf16 on the MXU, f32 accumulation,
    # back to bf16 for the score/context matmuls.
    q = (jnp.dot(xq, wq_ref[0], preferred_element_type=jnp.float32)
         + bq_ref[0]).astype(xq.dtype)          # (tq, E)
    k = (jnp.dot(xkv, wk_ref[0], preferred_element_type=jnp.float32)
         + bk_ref[0]).astype(xq.dtype)          # (L, E)
    v = (jnp.dot(xkv, wv_ref[0], preferred_element_type=jnp.float32)
         + bv_ref[0]).astype(xq.dtype)          # (L, E)

    # Scaled dot-product attention; softmax statistics in f32.
    s = jax.lax.dot_general(q, k, (((1,), (1,)), ((), ())),
                            preferred_element_type=jnp.float32) * scale  # (tq, L)
    s = s - jnp.max(s, axis=-1, keepdims=True)
    p = jnp.exp(s)
    # Exact reciprocal (approx=False) so attention rows sum to 1 like the
    # PyTorch reference.
    p = p * pl.reciprocal(jnp.sum(p, axis=-1, keepdims=True), approx=False)
    a_ref[0, 0] = p.astype(a_ref.dtype)         # bf16 attention probabilities

    ctx = jnp.dot(p.astype(v.dtype), v, preferred_element_type=jnp.float32)  # (tq, E)

    # Output projection accumulated over heads (K-tiled matmul with tk = E).
    acc_ref[...] += jnp.dot(ctx.astype(wo_ref.dtype), wo_ref[0],
                            preferred_element_type=jnp.float32)              # (tq, D)

    @pl.when(h == pl.num_programs(2) - 1)
    def _():
        o_ref[0] = (acc_ref[...] + bo_ref[...]).astype(o_ref.dtype)


def pallas_attention(x, wq, wk, wv, bq, bk, bv, wo, bo, *, tq_target=256):
    # x: (B, L, D) bf16.  wq/wk/wv: (H, D, E) bf16, wo: (H, E, D) bf16.
    # Returns new_x (B, L, D) bf16 and attn (B, H, L, L) bf16.
    B, L, D = x.shape
    H, _, E = wq.shape
    tq = _pick_tile(L, tq_target, _sublane_align(x.dtype))
    QT = L // tq

    head_w = pl.BlockSpec((1, D, E), lambda b, qi, h: (h, 0, 0))
    head_b = pl.BlockSpec((1, 1, E), lambda b, qi, h: (h, 0, 0))

    vmem = _vmem_limit_bytes(
        [((1, tq, D), jnp.bfloat16, 2),        # xq blocks
         ((1, L, D), jnp.bfloat16, 2),         # xkv blocks
         ((1, D, E), jnp.bfloat16, 6),         # wq/wk/wv
         ((1, 1, E), jnp.float32, 6),          # bq/bk/bv
         ((1, E, D), jnp.bfloat16, 2),         # wo
         ((1, D), jnp.float32, 1),             # bo (single-buffered)
         ((1, tq, D), jnp.bfloat16, 2),        # new_x out
         ((1, 1, tq, L), jnp.bfloat16, 2),     # attn out
         ((tq, D), jnp.float32, 1)],           # acc scratch
        live_bytes=4 * tq * L * 4 + 3 * L * E * 4 + tq * D * 4)

    out, attn = pl.pallas_call(
        _attn_kernel,
        out_shape=(jax.ShapeDtypeStruct((B, L, D), x.dtype),
                   jax.ShapeDtypeStruct((B, H, L, L), jnp.bfloat16)),
        grid=(B, QT, H),
        in_specs=[
            pl.BlockSpec((1, tq, D), lambda b, qi, h: (b, qi, 0)),   # x (queries)
            pl.BlockSpec((1, L, D), lambda b, qi, h: (b, 0, 0)),     # x (keys/values)
            head_w, head_w, head_w,                                  # wq, wk, wv
            head_b, head_b, head_b,                                  # bq, bk, bv
            pl.BlockSpec((1, E, D), lambda b, qi, h: (h, 0, 0)),     # wo (per-head rows)
            pl.BlockSpec((1, D), lambda b, qi, h: (0, 0),
                         pipeline_mode=pl.Buffered(1)),              # bo (constant)
        ],
        out_specs=(
            pl.BlockSpec((1, tq, D), lambda b, qi, h: (b, qi, 0)),       # new_x
            pl.BlockSpec((1, 1, tq, L), lambda b, qi, h: (b, h, qi, 0)), # attn
        ),
        scratch_shapes=[pltpu.VMEM((tq, D), jnp.float32)],
        compiler_params=pltpu.CompilerParams(
            dimension_semantics=("parallel", "parallel", "arbitrary"),
            vmem_limit_bytes=vmem),
    )(x, x, wq, wk, wv, bq, bk, bv, wo, bo)
    return out, attn


# ----------------------------- FFN + norms kernel ---------------------------

def _ffn_norm_kernel(x_ref, a_ref, w1_ref, b1_ref, w2_ref, b2_ref,
                     g1_ref, be1_ref, g2_ref, be2_ref, o_ref):
    # Fused: residual + LN1 + conv1(1x1)+relu + conv2(1x1) + residual + LN2.
    eps = 1e-5
    x = x_ref[0].astype(jnp.float32) + a_ref[0].astype(jnp.float32)   # (tl, D)

    # norm1 (stats in f32)
    mu = jnp.mean(x, axis=-1, keepdims=True)
    var = jnp.mean((x - mu) ** 2, axis=-1, keepdims=True)
    y = (x - mu) * jax.lax.rsqrt(var + eps)
    y = y * g1_ref[...] + be1_ref[...]

    # conv1 (kernel_size=1) + relu — bf16 on the MXU, f32 accumulation
    h = jnp.dot(y.astype(w1_ref.dtype), w1_ref[...],
                preferred_element_type=jnp.float32) + b1_ref[...]
    h = jnp.maximum(h, 0.0)                                            # (tl, Fd)

    # conv2 (kernel_size=1)
    z = jnp.dot(h.astype(w2_ref.dtype), w2_ref[...],
                preferred_element_type=jnp.float32) + b2_ref[...]

    # residual + norm2
    s = y + z
    mu2 = jnp.mean(s, axis=-1, keepdims=True)
    var2 = jnp.mean((s - mu2) ** 2, axis=-1, keepdims=True)
    sn = (s - mu2) * jax.lax.rsqrt(var2 + eps)
    o_ref[0] = (sn * g2_ref[...] + be2_ref[...]).astype(o_ref.dtype)


def pallas_ffn_norm(x, attn_out, w1, b1, w2, b2, g1, be1, g2, be2,
                    *, tl_target=256):
    B, L, D = x.shape
    Fd = w1.shape[1]
    tl = _pick_tile(L, tl_target, _sublane_align(x.dtype))
    act_spec = pl.BlockSpec((1, tl, D), lambda b, l: (b, l, 0))

    def const(shape):
        # Constant-index resident weights: single-buffered (no duplicate copy).
        return pl.BlockSpec(shape, lambda b, l: (0, 0),
                            pipeline_mode=pl.Buffered(1))

    vmem = _vmem_limit_bytes(
        [((1, tl, D), jnp.bfloat16, 4),        # x + attn_out blocks
         ((D, Fd), jnp.bfloat16, 1),           # w1
         ((Fd, D), jnp.bfloat16, 1),           # w2
         ((1, Fd), jnp.float32, 1),            # b1
         ((1, D), jnp.float32, 5),             # b2, g1, be1, g2, be2
         ((1, tl, D), jnp.bfloat16, 2)],       # out blocks
        live_bytes=tl * Fd * 4 + 4 * tl * D * 4)   # (tl, Fd) f32 + f32 temps

    return pl.pallas_call(
        _ffn_norm_kernel,
        out_shape=jax.ShapeDtypeStruct((B, L, D), x.dtype),
        grid=(B, L // tl),
        in_specs=[act_spec, act_spec,
                  const((D, Fd)), const((1, Fd)),
                  const((Fd, D)), const((1, D)),
                  const((1, D)), const((1, D)),
                  const((1, D)), const((1, D))],
        out_specs=act_spec,
        compiler_params=pltpu.CompilerParams(
            dimension_semantics=("parallel", "parallel"),
            vmem_limit_bytes=vmem),
    )(x, attn_out, w1, b1, w2, b2, g1, be1, g2, be2)


# ------------------------------- EncoderLayer -------------------------------

def init_params(key, d_model, d_ff, n_heads, dtype=jnp.bfloat16):
    # Weights stored in bf16 (MXU-native); biases / norm params in f32.
    E = d_model // n_heads
    ks = jax.random.split(key, 12)
    sc = 0.02

    def w(k, shape):
        return (sc * jax.random.normal(k, shape, jnp.float32)).astype(dtype)

    def b(k, shape):
        return sc * jax.random.normal(k, shape, jnp.float32)

    return {
        # per-head projection weights: wq/wk/wv[h] is (d_model, E)
        "wq": w(ks[0], (n_heads, d_model, E)),
        "wk": w(ks[1], (n_heads, d_model, E)),
        "wv": w(ks[2], (n_heads, d_model, E)),
        "bq": b(ks[3], (n_heads, 1, E)),
        "bk": b(ks[4], (n_heads, 1, E)),
        "bv": b(ks[5], (n_heads, 1, E)),
        # output projection split by head rows: wo[h] = Wo[h*E:(h+1)*E, :]
        "wo": w(ks[6], (n_heads, E, d_model)),
        "bo": b(ks[7], (1, d_model)),
        # conv1 / conv2 (kernel_size=1) as matmuls
        "w1": w(ks[8], (d_model, d_ff)),
        "b1": b(ks[9], (1, d_ff)),
        "w2": w(ks[10], (d_ff, d_model)),
        "b2": b(ks[11], (1, d_model)),
        # layer norms
        "g1": jnp.ones((1, d_model), jnp.float32),
        "be1": jnp.zeros((1, d_model), jnp.float32),
        "g2": jnp.ones((1, d_model), jnp.float32),
        "be2": jnp.zeros((1, d_model), jnp.float32),
    }


@jax.jit
def encoder_layer_forward(x, params):
    # x: (B, L, d_model). Dropout is identity (eval mode).
    # TODO(synk): attn_mask is not supported (treated as None, as in the demo).
    xc = x.astype(params["wq"].dtype)    # bf16 activations on the HBM/MXU path

    # Fused projections + multi-head SDPA + output projection (one kernel).
    new_x, attn = pallas_attention(
        xc, params["wq"], params["wk"], params["wv"],
        params["bq"], params["bk"], params["bv"],
        params["wo"], params["bo"])

    # Fused residual + norm1 + conv1(relu) + conv2 + residual + norm2.
    out = pallas_ffn_norm(
        xc, new_x,
        params["w1"], params["b1"], params["w2"], params["b2"],
        params["g1"], params["be1"], params["g2"], params["be2"])
    return out, attn


# ----------------------------------- main -----------------------------------

if __name__ == "__main__":
    B, L, d_model, d_ff, n_heads = 2, 8, 32, 64, 4

    key = jax.random.PRNGKey(0)
    kx, kp = jax.random.split(key)
    x = jax.random.normal(kx, (B, L, d_model), jnp.float32)
    params = init_params(kp, d_model, d_ff, n_heads)

    out, attn = encoder_layer_forward(x, params)
    jax.block_until_ready(out)
    jax.block_until_ready(attn)

    assert out.shape == (B, L, d_model)
    assert attn.shape == (B, n_heads, L, L)
    assert bool(jnp.all(jnp.isfinite(out.astype(jnp.float32))))
    row_sums = jnp.sum(attn.astype(jnp.float32), axis=-1)
    assert bool(jnp.allclose(row_sums, 1.0, atol=5e-2))   # bf16 probs, loose tol
    print("KERNEL_OK")
</pallas_src>

<mosaic_0001>
module attributes {stable_mosaic.version = 11 : i64} {
  func.func @_attn_kernel(%arg0: i32, %arg1: i32, %arg2: i32, %arg3: memref<1x8x32xbf16, #tpu.memory_space<vmem>>, %arg4: memref<1x8x32xbf16, #tpu.memory_space<vmem>>, %arg5: memref<1x32x8xbf16, #tpu.memory_space<vmem>>, %arg6: memref<1x32x8xbf16, #tpu.memory_space<vmem>>, %arg7: memref<1x32x8xbf16, #tpu.memory_space<vmem>>, %arg8: memref<1x1x8xf32, #tpu.memory_space<vmem>>, %arg9: memref<1x1x8xf32, #tpu.memory_space<vmem>>, %arg10: memref<1x1x8xf32, #tpu.memory_space<vmem>>, %arg11: memref<1x8x32xbf16, #tpu.memory_space<vmem>>, %arg12: memref<1x32xf32, #tpu.memory_space<vmem>>, %arg13: memref<1x8x32xbf16, #tpu.memory_space<vmem>>, %arg14: memref<1x1x8x8xbf16, #tpu.memory_space<vmem>>, %arg15: memref<8x32xf32, #tpu.memory_space<vmem>>) attributes {dimension_semantics = [#tpu.dimension_semantics<parallel>, #tpu.dimension_semantics<parallel>, #tpu.dimension_semantics<arbitrary>], iteration_bounds = array<i64: 2, 1, 4>, scalar_prefetch = 0 : i64, scratch_operands = 1 : i64, tpu.core_type = #tpu.core_type<tc>, window_params = [{transform_indices = @transform_0, window_bounds = array<i64: 1, 8, 32>}, {transform_indices = @transform_1, window_bounds = array<i64: 1, 8, 32>}, {transform_indices = @transform_2, window_bounds = array<i64: 1, 32, 8>}, {transform_indices = @transform_3, window_bounds = array<i64: 1, 32, 8>}, {transform_indices = @transform_4, window_bounds = array<i64: 1, 32, 8>}, {transform_indices = @transform_5, window_bounds = array<i64: 1, 1, 8>}, {transform_indices = @transform_6, window_bounds = array<i64: 1, 1, 8>}, {transform_indices = @transform_7, window_bounds = array<i64: 1, 1, 8>}, {transform_indices = @transform_8, window_bounds = array<i64: 1, 8, 32>}, {pipeline_mode = #tpu.pipeline_mode<synchronous>, transform_indices = @transform_9, window_bounds = array<i64: 1, 32>}, {transform_indices = @transform_10, window_bounds = array<i64: 1, 8, 32>}, {transform_indices = @transform_11, window_bounds = array<i64: 1, 1, 8, 8>}]} {
    %c0_i32 = arith.constant 0 : i32
    %0 = arith.cmpi eq, %arg2, %c0_i32 : i32
    %1 = arith.extui %0 : i1 to i32
    %c0_i32_0 = arith.constant 0 : i32
    %2 = arith.cmpi ne, %1, %c0_i32_0 : i32
    scf.if %2 {
      %cst_44 = arith.constant 0.000000e+00 : f32
      %60 = vector.broadcast %cst_44 : f32 to vector<8x32xf32>
      %c0_45 = arith.constant 0 : index
      %c0_46 = arith.constant 0 : index
      %61 = vector.load %arg15[%c0_45, %c0_46] : memref<8x32xf32, #tpu.memory_space<vmem>>, vector<8x32xf32>
      tpu.vector_store %arg15[%c0_45, %c0_46], %60 {strides = array<i32>} : memref<8x32xf32, #tpu.memory_space<vmem>>, vector<8x32xf32>,
    } else {
    }
    %c0 = arith.constant 0 : index
    %c0_1 = arith.constant 0 : index
    %c0_2 = arith.constant 0 : index
    %3 = vector.load %arg3[%c0, %c0_1, %c0_2] : memref<1x8x32xbf16, #tpu.memory_space<vmem>>, vector<1x8x32xbf16>
    %4 = vector.shape_cast %3 : vector<1x8x32xbf16> to vector<8x32xbf16>
    %c0_3 = arith.constant 0 : index
    %c0_4 = arith.constant 0 : index
    %c0_5 = arith.constant 0 : index
    %5 = vector.load %arg4[%c0_3, %c0_4, %c0_5] : memref<1x8x32xbf16, #tpu.memory_space<vmem>>, vector<1x8x32xbf16>
    %6 = vector.shape_cast %5 : vector<1x8x32xbf16> to vector<8x32xbf16>
    %c0_6 = arith.constant 0 : index
    %c0_7 = arith.constant 0 : index
    %c0_8 = arith.constant 0 : index
    %7 = vector.load %arg5[%c0_6, %c0_7, %c0_8] : memref<1x32x8xbf16, #tpu.memory_space<vmem>>, vector<1x32x8xbf16>
    %8 = vector.shape_cast %7 : vector<1x32x8xbf16> to vector<32x8xbf16>
    %cst = arith.constant dense<0.000000e+00> : vector<8x8xf32>
    %9 = tpu.matmul %4, %8, %cst {dimension_numbers = #tpu.dot_dimension_numbers<[1], [0], [0], [1], [0, 0, 1, 1], [], []>} : vector<8x32xbf16>, vector<32x8xbf16>, vector<8x8xf32> -> vector<8x8xf32>
    %c0_9 = arith.constant 0 : index
    %c0_10 = arith.constant 0 : index
    %c0_11 = arith.constant 0 : index
    %10 = vector.load %arg8[%c0_9, %c0_10, %c0_11] : memref<1x1x8xf32, #tpu.memory_space<vmem>>, vector<1x1x8xf32>
    %11 = vector.shape_cast %10 : vector<1x1x8xf32> to vector<1x8xf32>
    %12 = vector.broadcast %11 : vector<1x8xf32> to vector<8x8xf32>
    %13 = arith.addf %9, %12 : vector<8x8xf32>
    %14 = arith.truncf %13 : vector<8x8xf32> to vector<8x8xbf16>
    %c0_12 = arith.constant 0 : index
    %c0_13 = arith.constant 0 : index
    %c0_14 = arith.constant 0 : index
    %15 = vector.load %arg6[%c0_12, %c0_13, %c0_14] : memref<1x32x8xbf16, #tpu.memory_space<vmem>>, vector<1x32x8xbf16>
    %16 = vector.shape_cast %15 : vector<1x32x8xbf16> to vector<32x8xbf16>
    %cst_15 = arith.constant dense<0.000000e+00> : vector<8x8xf32>
    %17 = tpu.matmul %6, %16, %cst_15 {dimension_numbers = #tpu.dot_dimension_numbers<[1], [0], [0], [1], [0, 0, 1, 1], [], []>} : vector<8x32xbf16>, vector<32x8xbf16>, vector<8x8xf32> -> vector<8x8xf32>
    %c0_16 = arith.constant 0 : index
    %c0_17 = arith.constant 0 : index
    %c0_18 = arith.constant 0 : index
    %18 = vector.load %arg9[%c0_16, %c0_17, %c0_18] : memref<1x1x8xf32, #tpu.memory_space<vmem>>, vector<1x1x8xf32>
    %19 = vector.shape_cast %18 : vector<1x1x8xf32> to vector<1x8xf32>
    %20 = vector.broadcast %19 : vector<1x8xf32> to vector<8x8xf32>
    %21 = arith.addf %17, %20 : vector<8x8xf32>
    %22 = arith.truncf %21 : vector<8x8xf32> to vector<8x8xbf16>
    %c0_19 = arith.constant 0 : index
    %c0_20 = arith.constant 0 : index
    %c0_21 = arith.constant 0 : index
    %23 = vector.load %arg7[%c0_19, %c0_20, %c0_21] : memref<1x32x8xbf16, #tpu.memory_space<vmem>>, vector<1x32x8xbf16>
    %24 = vector.shape_cast %23 : vector<1x32x8xbf16> to vector<32x8xbf16>
    %cst_22 = arith.constant dense<0.000000e+00> : vector<8x8xf32>
    %25 = tpu.matmul %6, %24, %cst_22 {dimension_numbers = #tpu.dot_dimension_numbers<[1], [0], [0], [1], [0, 0, 1, 1], [], []>} : vector<8x32xbf16>, vector<32x8xbf16>, vector<8x8xf32> -> vector<8x8xf32>
    %c0_23 = arith.constant 0 : index
    %c0_24 = arith.constant 0 : index
    %c0_25 = arith.constant 0 : index
    %26 = vector.load %arg10[%c0_23, %c0_24, %c0_25] : memref<1x1x8xf32, #tpu.memory_space<vmem>>, vector<1x1x8xf32>
    %27 = vector.shape_cast %26 : vector<1x1x8xf32> to vector<1x8xf32>
    %28 = vector.broadcast %27 : vector<1x8xf32> to vector<8x8xf32>
    %29 = arith.addf %25, %28 : vector<8x8xf32>
    %30 = arith.truncf %29 : vector<8x8xf32> to vector<8x8xbf16>
    %cst_26 = arith.constant dense<0.000000e+00> : vector<8x8xf32>
    %31 = tpu.matmul %14, %22, %cst_26 {dimension_numbers = #tpu.dot_dimension_numbers<[1], [1], [0], [0], [0, 0, 1, 0], [], []>} : vector<8x8xbf16>, vector<8x8xbf16>, vector<8x8xf32> -> vector<8x8xf32>
    %cst_27 = arith.constant 0.353553385 : f32
    %32 = vector.broadcast %cst_27 : f32 to vector<8x8xf32>
    %33 = arith.mulf %31, %32 : vector<8x8xf32>
    %cst_28 = arith.constant dense<0xFF800000> : vector<8xf32>
    %34 = vector.multi_reduction <maximumf>, %33, %cst_28 [1] : vector<8x8xf32> to vector<8xf32>
    %35 = vector.shape_cast %34 : vector<8xf32> to vector<8x1xf32>
    %36 = vector.broadcast %35 : vector<8x1xf32> to vector<8x8xf32>
    %37 = arith.subf %33, %36 : vector<8x8xf32>
    %38 = math.exp %37 : vector<8x8xf32>
    %cst_29 = arith.constant dense<0.000000e+00> : vector<8xf32>
    %39 = vector.multi_reduction <add>, %38, %cst_29 [1] : vector<8x8xf32> to vector<8xf32>
    %40 = vector.shape_cast %39 : vector<8xf32> to vector<8x1xf32>
    %41 = tpu.reciprocal %40 : vector<8x1xf32> -> vector<8x1xf32>
    %42 = vector.broadcast %41 : vector<8x1xf32> to vector<8x8xf32>
    %43 = arith.mulf %38, %42 : vector<8x8xf32>
    %44 = arith.truncf %43 : vector<8x8xf32> to vector<8x8xbf16>
    %c0_30 = arith.constant 0 : index
    %c0_31 = arith.constant 0 : index
    %c0_32 = arith.constant 0 : index
    %c0_33 = arith.constant 0 : index
    %45 = vector.load %arg14[%c0_30, %c0_31, %c0_32, %c0_33] : memref<1x1x8x8xbf16, #tpu.memory_space<vmem>>, vector<1x1x8x8xbf16>
    %46 = vector.shape_cast %45 : vector<1x1x8x8xbf16> to vector<8x8xbf16>
    %47 = vector.shape_cast %44 : vector<8x8xbf16> to vector<1x1x8x8xbf16>
    tpu.vector_store %arg14[%c0_30, %c0_31, %c0_32, %c0_33], %47 {strides = array<i32>} : memref<1x1x8x8xbf16, #tpu.memory_space<vmem>>, vector<1x1x8x8xbf16>,
    %48 = arith.truncf %43 : vector<8x8xf32> to vector<8x8xbf16>
    %cst_34 = arith.constant dense<0.000000e+00> : vector<8x8xf32>
    %49 = tpu.matmul %48, %30, %cst_34 {dimension_numbers = #tpu.dot_dimension_numbers<[1], [0], [0], [1], [0, 0, 1, 1], [], []>} : vector<8x8xbf16>, vector<8x8xbf16>, vector<8x8xf32> -> vector<8x8xf32>
    %c0_35 = arith.constant 0 : index
    %c0_36 = arith.constant 0 : index
    %50 = vector.load %arg15[%c0_35, %c0_36] : memref<8x32xf32, #tpu.memory_space<vmem>>, vector<8x32xf32>
    %51 = arith.truncf %49 : vector<8x8xf32> to vector<8x8xbf16>
    %c0_37 = arith.constant 0 : index
    %c0_38 = arith.constant 0 : index
    %c0_39 = arith.constant 0 : index
    %52 = vector.load %arg11[%c0_37, %c0_38, %c0_39] : memref<1x8x32xbf16, #tpu.memory_space<vmem>>, vector<1x8x32xbf16>
    %53 = vector.shape_cast %52 : vector<1x8x32xbf16> to vector<8x32xbf16>
    %cst_40 = arith.constant dense<0.000000e+00> : vector<8x32xf32>
    %54 = tpu.matmul %51, %53, %cst_40 {dimension_numbers = #tpu.dot_dimension_numbers<[1], [0], [0], [1], [0, 0, 1, 1], [], []>} : vector<8x8xbf16>, vector<8x32xbf16>, vector<8x32xf32> -> vector<8x32xf32>
    %55 = arith.addf %50, %54 : vector<8x32xf32>
    %c0_41 = arith.constant 0 : index
    %c0_42 = arith.constant 0 : index
    %56 = vector.load %arg15[%c0_41, %c0_42] : memref<8x32xf32, #tpu.memory_space<vmem>>, vector<8x32xf32>
    tpu.vector_store %arg15[%c0_41, %c0_42], %55 {strides = array<i32>} : memref<8x32xf32, #tpu.memory_space<vmem>>, vector<8x32xf32>,
    %c3_i32 = arith.constant 3 : i32
    %57 = arith.cmpi eq, %arg2, %c3_i32 : i32
    %58 = arith.extui %57 : i1 to i32
    %c0_i32_43 = arith.constant 0 : i32
    %59 = arith.cmpi ne, %58, %c0_i32_43 : i32
    scf.if %59 {
      %c0_44 = arith.constant 0 : index
      %c0_45 = arith.constant 0 : index
      %60 = vector.load %arg15[%c0_44, %c0_45] : memref<8x32xf32, #tpu.memory_space<vmem>>, vector<8x32xf32>
      %c0_46 = arith.constant 0 : index
      %c0_47 = arith.constant 0 : index
      %61 = vector.load %arg12[%c0_46, %c0_47] : memref<1x32xf32, #tpu.memory_space<vmem>>, vector<1x32xf32>
      %62 = vector.broadcast %61 : vector<1x32xf32> to vector<8x32xf32>
      %63 = arith.addf %60, %62 : vector<8x32xf32>
      %64 = arith.truncf %63 : vector<8x32xf32> to vector<8x32xbf16>
      %c0_48 = arith.constant 0 : index
      %c0_49 = arith.constant 0 : index
      %c0_50 = arith.constant 0 : index
      %65 = vector.load %arg13[%c0_48, %c0_49, %c0_50] : memref<1x8x32xbf16, #tpu.memory_space<vmem>>, vector<1x8x32xbf16>
      %66 = vector.shape_cast %65 : vector<1x8x32xbf16> to vector<8x32xbf16>
      %67 = vector.shape_cast %64 : vector<8x32xbf16> to vector<1x8x32xbf16>
      tpu.vector_store %arg13[%c0_48, %c0_49, %c0_50], %67 {strides = array<i32>} : memref<1x8x32xbf16, #tpu.memory_space<vmem>>, vector<1x8x32xbf16>,
    } else {
    }
    return
  }
  func.func @transform_0(%arg0: i32, %arg1: i32, %arg2: i32) -> (i32, i32, i32) {
    %c0_i32 = arith.constant 0 : i32
    %c0_i32_0 = arith.constant 0 : i32
    return %arg0, %arg1, %c0_i32 : i32, i32, i32
  }
  func.func @transform_1(%arg0: i32, %arg1: i32, %arg2: i32) -> (i32, i32, i32) {
    %c0_i32 = arith.constant 0 : i32
    %c0_i32_0 = arith.constant 0 : i32
    %c0_i32_1 = arith.constant 0 : i32
    return %arg0, %c0_i32, %c0_i32_0 : i32, i32, i32
  }
  func.func @transform_2(%arg0: i32, %arg1: i32, %arg2: i32) -> (i32, i32, i32) {
    %c0_i32 = arith.constant 0 : i32
    %c0_i32_0 = arith.constant 0 : i32
    %c0_i32_1 = arith.constant 0 : i32
    return %arg2, %c0_i32, %c0_i32_0 : i32, i32, i32
  }
  func.func @transform_3(%arg0: i32, %arg1: i32, %arg2: i32) -> (i32, i32, i32) {
    %c0_i32 = arith.constant 0 : i32
    %c0_i32_0 = arith.constant 0 : i32
    %c0_i32_1 = arith.constant 0 : i32
    return %arg2, %c0_i32, %c0_i32_0 : i32, i32, i32
  }
  func.func @transform_4(%arg0: i32, %arg1: i32, %arg2: i32) -> (i32, i32, i32) {
    %c0_i32 = arith.constant 0 : i32
    %c0_i32_0 = arith.constant 0 : i32
    %c0_i32_1 = arith.constant 0 : i32
    return %arg2, %c0_i32, %c0_i32_0 : i32, i32, i32
  }
  func.func @transform_5(%arg0: i32, %arg1: i32, %arg2: i32) -> (i32, i32, i32) {
    %c0_i32 = arith.constant 0 : i32
    %c0_i32_0 = arith.constant 0 : i32
    %c0_i32_1 = arith.constant 0 : i32
    return %arg2, %c0_i32, %c0_i32_0 : i32, i32, i32
  }
  func.func @transform_6(%arg0: i32, %arg1: i32, %arg2: i32) -> (i32, i32, i32) {
    %c0_i32 = arith.constant 0 : i32
    %c0_i32_0 = arith.constant 0 : i32
    %c0_i32_1 = arith.constant 0 : i32
    return %arg2, %c0_i32, %c0_i32_0 : i32, i32, i32
  }
  func.func @transform_7(%arg0: i32, %arg1: i32, %arg2: i32) -> (i32, i32, i32) {
    %c0_i32 = arith.constant 0 : i32
    %c0_i32_0 = arith.constant 0 : i32
    %c0_i32_1 = arith.constant 0 : i32
    return %arg2, %c0_i32, %c0_i32_0 : i32, i32, i32
  }
  func.func @transform_8(%arg0: i32, %arg1: i32, %arg2: i32) -> (i32, i32, i32) {
    %c0_i32 = arith.constant 0 : i32
    %c0_i32_0 = arith.constant 0 : i32
    %c0_i32_1 = arith.constant 0 : i32
    return %arg2, %c0_i32, %c0_i32_0 : i32, i32, i32
  }
  func.func @transform_9(%arg0: i32, %arg1: i32, %arg2: i32) -> (i32, i32) {
    %c0_i32 = arith.constant 0 : i32
    %c0_i32_0 = arith.constant 0 : i32
    %c0_i32_1 = arith.constant 0 : i32
    return %c0_i32, %c0_i32_0 : i32, i32
  }
  func.func @transform_10(%arg0: i32, %arg1: i32, %arg2: i32) -> (i32, i32, i32) {
    %c0_i32 = arith.constant 0 : i32
    %c0_i32_0 = arith.constant 0 : i32
    return %arg0, %arg1, %c0_i32 : i32, i32, i32
  }
  func.func @transform_11(%arg0: i32, %arg1: i32, %arg2: i32) -> (i32, i32, i32, i32) {
    %c0_i32 = arith.constant 0 : i32
    %c0_i32_0 = arith.constant 0 : i32
    return %arg0, %arg2, %arg1, %c0_i32 : i32, i32, i32, i32
  }
}

module attributes {stable_mosaic.version = 11 : i64} {
  func.func @_ffn_norm_kernel(%arg0: i32, %arg1: i32, %arg2: memref<1x8x32xbf16, #tpu.memory_space<vmem>>, %arg3: memref<1x8x32xbf16, #tpu.memory_space<vmem>>, %arg4: memref<32x64xbf16, #tpu.memory_space<vmem>>, %arg5: memref<1x64xf32, #tpu.memory_space<vmem>>, %arg6: memref<64x32xbf16, #tpu.memory_space<vmem>>, %arg7: memref<1x32xf32, #tpu.memory_space<vmem>>, %arg8: memref<1x32xf32, #tpu.memory_space<vmem>>, %arg9: memref<1x32xf32, #tpu.memory_space<vmem>>, %arg10: memref<1x32xf32, #tpu.memory_space<vmem>>, %arg11: memref<1x32xf32, #tpu.memory_space<vmem>>, %arg12: memref<1x8x32xbf16, #tpu.memory_space<vmem>>) attributes {dimension_semantics = [#tpu.dimension_semantics<parallel>, #tpu.dimension_semantics<parallel>], iteration_bounds = array<i64: 2, 1>, scalar_prefetch = 0 : i64, scratch_operands = 0 : i64, tpu.core_type = #tpu.core_type<tc>, window_params = [{transform_indices = @transform_0, window_bounds = array<i64: 1, 8, 32>}, {transform_indices = @transform_1, window_bounds = array<i64: 1, 8, 32>}, {pipeline_mode = #tpu.pipeline_mode<synchronous>, transform_indices = @transform_2, window_bounds = array<i64: 32, 64>}, {pipeline_mode = #tpu.pipeline_mode<synchronous>, transform_indices = @transform_3, window_bounds = array<i64: 1, 64>}, {pipeline_mode = #tpu.pipeline_mode<synchronous>, transform_indices = @transform_4, window_bounds = array<i64: 64, 32>}, {pipeline_mode = #tpu.pipeline_mode<synchronous>, transform_indices = @transform_5, window_bounds = array<i64: 1, 32>}, {pipeline_mode = #tpu.pipeline_mode<synchronous>, transform_indices = @transform_6, window_bounds = array<i64: 1, 32>}, {pipeline_mode = #tpu.pipeline_mode<synchronous>, transform_indices = @transform_7, window_bounds = array<i64: 1, 32>}, {pipeline_mode = #tpu.pipeline_mode<synchronous>, transform_indices = @transform_8, window_bounds = array<i64: 1, 32>}, {pipeline_mode = #tpu.pipeline_mode<synchronous>, transform_indices = @transform_9, window_bounds = array<i64: 1, 32>}, {transform_indices = @transform_10, window_bounds = array<i64: 1, 8, 32>}]} {
    %c0 = arith.constant 0 : index
    %c0_0 = arith.constant 0 : index
    %c0_1 = arith.constant 0 : index
    %0 = vector.load %arg2[%c0, %c0_0, %c0_1] : memref<1x8x32xbf16, #tpu.memory_space<vmem>>, vector<1x8x32xbf16>
    %1 = vector.shape_cast %0 : vector<1x8x32xbf16> to vector<8x32xbf16>
    %2 = arith.extf %1 : vector<8x32xbf16> to vector<8x32xf32>
    %c0_2 = arith.constant 0 : index
    %c0_3 = arith.constant 0 : index
    %c0_4 = arith.constant 0 : index
    %3 = vector.load %arg3[%c0_2, %c0_3, %c0_4] : memref<1x8x32xbf16, #tpu.memory_space<vmem>>, vector<1x8x32xbf16>
    %4 = vector.shape_cast %3 : vector<1x8x32xbf16> to vector<8x32xbf16>
    %5 = arith.extf %4 : vector<8x32xbf16> to vector<8x32xf32>
    %6 = arith.addf %2, %5 : vector<8x32xf32>
    %cst = arith.constant dense<0.000000e+00> : vector<8xf32>
    %7 = vector.multi_reduction <add>, %6, %cst [1] : vector<8x32xf32> to vector<8xf32>
    %8 = vector.shape_cast %7 : vector<8xf32> to vector<8x1xf32>
    %cst_5 = arith.constant 3.200000e+01 : f32
    %9 = vector.broadcast %cst_5 : f32 to vector<8x1xf32>
    %10 = arith.divf %8, %9 : vector<8x1xf32>
    %11 = vector.broadcast %10 : vector<8x1xf32> to vector<8x32xf32>
    %12 = arith.subf %6, %11 : vector<8x32xf32>
    %13 = arith.mulf %12, %12 : vector<8x32xf32>
    %cst_6 = arith.constant dense<0.000000e+00> : vector<8xf32>
    %14 = vector.multi_reduction <add>, %13, %cst_6 [1] : vector<8x32xf32> to vector<8xf32>
    %15 = vector.shape_cast %14 : vector<8xf32> to vector<8x1xf32>
    %cst_7 = arith.constant 3.200000e+01 : f32
    %16 = vector.broadcast %cst_7 : f32 to vector<8x1xf32>
    %17 = arith.divf %15, %16 : vector<8x1xf32>
    %18 = vector.broadcast %10 : vector<8x1xf32> to vector<8x32xf32>
    %19 = arith.subf %6, %18 : vector<8x32xf32>
    %cst_8 = arith.constant 9.99999974E-6 : f32
    %20 = vector.broadcast %cst_8 : f32 to vector<8x1xf32>
    %21 = arith.addf %17, %20 : vector<8x1xf32>
    %22 = math.rsqrt %21 : vector<8x1xf32>
    %23 = vector.broadcast %22 : vector<8x1xf32> to vector<8x32xf32>
    %24 = arith.mulf %19, %23 : vector<8x32xf32>
    %c0_9 = arith.constant 0 : index
    %c0_10 = arith.constant 0 : index
    %25 = vector.load %arg8[%c0_9, %c0_10] : memref<1x32xf32, #tpu.memory_space<vmem>>, vector<1x32xf32>
    %26 = vector.broadcast %25 : vector<1x32xf32> to vector<8x32xf32>
    %27 = arith.mulf %24, %26 : vector<8x32xf32>
    %c0_11 = arith.constant 0 : index
    %c0_12 = arith.constant 0 : index
    %28 = vector.load %arg9[%c0_11, %c0_12] : memref<1x32xf32, #tpu.memory_space<vmem>>, vector<1x32xf32>
    %29 = vector.broadcast %28 : vector<1x32xf32> to vector<8x32xf32>
    %30 = arith.addf %27, %29 : vector<8x32xf32>
    %31 = arith.truncf %30 : vector<8x32xf32> to vector<8x32xbf16>
    %c0_13 = arith.constant 0 : index
    %c0_14 = arith.constant 0 : index
    %32 = vector.load %arg4[%c0_13, %c0_14] : memref<32x64xbf16, #tpu.memory_space<vmem>>, vector<32x64xbf16>
    %cst_15 = arith.constant dense<0.000000e+00> : vector<8x64xf32>
    %33 = tpu.matmul %31, %32, %cst_15 {dimension_numbers = #tpu.dot_dimension_numbers<[1], [0], [0], [1], [0, 0, 1, 1], [], []>} : vector<8x32xbf16>, vector<32x64xbf16>, vector<8x64xf32> -> vector<8x64xf32>
    %c0_16 = arith.constant 0 : index
    %c0_17 = arith.constant 0 : index
    %34 = vector.load %arg5[%c0_16, %c0_17] : memref<1x64xf32, #tpu.memory_space<vmem>>, vector<1x64xf32>
    %35 = vector.broadcast %34 : vector<1x64xf32> to vector<8x64xf32>
    %36 = arith.addf %33, %35 : vector<8x64xf32>
    %cst_18 = arith.constant 0.000000e+00 : f32
    %37 = vector.broadcast %cst_18 : f32 to vector<8x64xf32>
    %38 = arith.maximumf %36, %37 : vector<8x64xf32>
    %39 = arith.truncf %38 : vector<8x64xf32> to vector<8x64xbf16>
    %c0_19 = arith.constant 0 : index
    %c0_20 = arith.constant 0 : index
    %40 = vector.load %arg6[%c0_19, %c0_20] : memref<64x32xbf16, #tpu.memory_space<vmem>>, vector<64x32xbf16>
    %cst_21 = arith.constant dense<0.000000e+00> : vector<8x32xf32>
    %41 = tpu.matmul %39, %40, %cst_21 {dimension_numbers = #tpu.dot_dimension_numbers<[1], [0], [0], [1], [0, 0, 1, 1], [], []>} : vector<8x64xbf16>, vector<64x32xbf16>, vector<8x32xf32> -> vector<8x32xf32>
    %c0_22 = arith.constant 0 : index
    %c0_23 = arith.constant 0 : index
    %42 = vector.load %arg7[%c0_22, %c0_23] : memref<1x32xf32, #tpu.memory_space<vmem>>, vector<1x32xf32>
    %43 = vector.broadcast %42 : vector<1x32xf32> to vector<8x32xf32>
    %44 = arith.addf %41, %43 : vector<8x32xf32>
    %45 = arith.addf %30, %44 : vector<8x32xf32>
    %cst_24 = arith.constant dense<0.000000e+00> : vector<8xf32>
    %46 = vector.multi_reduction <add>, %45, %cst_24 [1] : vector<8x32xf32> to vector<8xf32>
    %47 = vector.shape_cast %46 : vector<8xf32> to vector<8x1xf32>
    %cst_25 = arith.constant 3.200000e+01 : f32
    %48 = vector.broadcast %cst_25 : f32 to vector<8x1xf32>
    %49 = arith.divf %47, %48 : vector<8x1xf32>
    %50 = vector.broadcast %49 : vector<8x1xf32> to vector<8x32xf32>
    %51 = arith.subf %45, %50 : vector<8x32xf32>
    %52 = arith.mulf %51, %51 : vector<8x32xf32>
    %cst_26 = arith.constant dense<0.000000e+00> : vector<8xf32>
    %53 = vector.multi_reduction <add>, %52, %cst_26 [1] : vector<8x32xf32> to vector<8xf32>
    %54 = vector.shape_cast %53 : vector<8xf32> to vector<8x1xf32>
    %cst_27 = arith.constant 3.200000e+01 : f32
    %55 = vector.broadcast %cst_27 : f32 to vector<8x1xf32>
    %56 = arith.divf %54, %55 : vector<8x1xf32>
    %57 = vector.broadcast %49 : vector<8x1xf32> to vector<8x32xf32>
    %58 = arith.subf %45, %57 : vector<8x32xf32>
    %cst_28 = arith.constant 9.99999974E-6 : f32
    %59 = vector.broadcast %cst_28 : f32 to vector<8x1xf32>
    %60 = arith.addf %56, %59 : vector<8x1xf32>
    %61 = math.rsqrt %60 : vector<8x1xf32>
    %62 = vector.broadcast %61 : vector<8x1xf32> to vector<8x32xf32>
    %63 = arith.mulf %58, %62 : vector<8x32xf32>
    %c0_29 = arith.constant 0 : index
    %c0_30 = arith.constant 0 : index
    %64 = vector.load %arg10[%c0_29, %c0_30] : memref<1x32xf32, #tpu.memory_space<vmem>>, vector<1x32xf32>
    %65 = vector.broadcast %64 : vector<1x32xf32> to vector<8x32xf32>
    %66 = arith.mulf %63, %65 : vector<8x32xf32>
    %c0_31 = arith.constant 0 : index
    %c0_32 = arith.constant 0 : index
    %67 = vector.load %arg11[%c0_31, %c0_32] : memref<1x32xf32, #tpu.memory_space<vmem>>, vector<1x32xf32>
    %68 = vector.broadcast %67 : vector<1x32xf32> to vector<8x32xf32>
    %69 = arith.addf %66, %68 : vector<8x32xf32>
    %70 = arith.truncf %69 : vector<8x32xf32> to vector<8x32xbf16>
    %c0_33 = arith.constant 0 : index
    %c0_34 = arith.constant 0 : index
    %c0_35 = arith.constant 0 : index
    %71 = vector.load %arg12[%c0_33, %c0_34, %c0_35] : memref<1x8x32xbf16, #tpu.memory_space<vmem>>, vector<1x8x32xbf16>
    %72 = vector.shape_cast %71 : vector<1x8x32xbf16> to vector<8x32xbf16>
    %73 = vector.shape_cast %70 : vector<8x32xbf16> to vector<1x8x32xbf16>
    tpu.vector_store %arg12[%c0_33, %c0_34, %c0_35], %73 {strides = array<i32>} : memref<1x8x32xbf16, #tpu.memory_space<vmem>>, vector<1x8x32xbf16>,
    return
  }
  func.func @transform_0(%arg0: i32, %arg1: i32) -> (i32, i32, i32) {
    %c0_i32 = arith.constant 0 : i32
    %c0_i32_0 = arith.constant 0 : i32
    return %arg0, %arg1, %c0_i32 : i32, i32, i32
  }
  func.func @transform_1(%arg0: i32, %arg1: i32) -> (i32, i32, i32) {
    %c0_i32 = arith.constant 0 : i32
    %c0_i32_0 = arith.constant 0 : i32
    return %arg0, %arg1, %c0_i32 : i32, i32, i32
  }
  func.func @transform_2(%arg0: i32, %arg1: i32) -> (i32, i32) {
    %c0_i32 = arith.constant 0 : i32
    %c0_i32_0 = arith.constant 0 : i32
    %c0_i32_1 = arith.constant 0 : i32
    return %c0_i32, %c0_i32_0 : i32, i32
  }
  func.func @transform_3(%arg0: i32, %arg1: i32) -> (i32, i32) {
    %c0_i32 = arith.constant 0 : i32
    %c0_i32_0 = arith.constant 0 : i32
    %c0_i32_1 = arith.constant 0 : i32
    return %c0_i32, %c0_i32_0 : i32, i32
  }
  func.func @transform_4(%arg0: i32, %arg1: i32) -> (i32, i32) {
    %c0_i32 = arith.constant 0 : i32
    %c0_i32_0 = arith.constant 0 : i32
    %c0_i32_1 = arith.constant 0 : i32
    return %c0_i32, %c0_i32_0 : i32, i32
  }
  func.func @transform_5(%arg0: i32, %arg1: i32) -> (i32, i32) {
    %c0_i32 = arith.constant 0 : i32
    %c0_i32_0 = arith.constant 0 : i32
    %c0_i32_1 = arith.constant 0 : i32
    return %c0_i32, %c0_i32_0 : i32, i32
  }
  func.func @transform_6(%arg0: i32, %arg1: i32) -> (i32, i32) {
    %c0_i32 = arith.constant 0 : i32
    %c0_i32_0 = arith.constant 0 : i32
    %c0_i32_1 = arith.constant 0 : i32
    return %c0_i32, %c0_i32_0 : i32, i32
  }
  func.func @transform_7(%arg0: i32, %arg1: i32) -> (i32, i32) {
    %c0_i32 = arith.constant 0 : i32
    %c0_i32_0 = arith.constant 0 : i32
    %c0_i32_1 = arith.constant 0 : i32
    return %c0_i32, %c0_i32_0 : i32, i32
  }
  func.func @transform_8(%arg0: i32, %arg1: i32) -> (i32, i32) {
    %c0_i32 = arith.constant 0 : i32
    %c0_i32_0 = arith.constant 0 : i32
    %c0_i32_1 = arith.constant 0 : i32
    return %c0_i32, %c0_i32_0 : i32, i32
  }
  func.func @transform_9(%arg0: i32, %arg1: i32) -> (i32, i32) {
    %c0_i32 = arith.constant 0 : i32
    %c0_i32_0 = arith.constant 0 : i32
    %c0_i32_1 = arith.constant 0 : i32
    return %c0_i32, %c0_i32_0 : i32, i32
  }
  func.func @transform_10(%arg0: i32, %arg1: i32) -> (i32, i32, i32) {
    %c0_i32 = arith.constant 0 : i32
    %c0_i32_0 = arith.constant 0 : i32
    return %arg0, %arg1, %c0_i32 : i32, i32, i32
  }
}

</mosaic_0001>

<llo_original>
// kernel: encoder_layer_forward.3
$region0: #{encoder_layer_forward.3}
  #allocation0 [shape = 'u32[]', space=smem, size = 0x4, offset = 0x4, fixed_abs, tag = 'smem constant byte address 0x4 - core index']
  #allocation1 [shape = 'u32[72,128]{1,0:T(1,128)}', space=vmem, size = 0x9000, scoped, tag = 'internal scratch']
  %s0 = inlined_call_operand.vmem [shape: bf16[2,8,32], index: 0, kind: input, shape index: {}]
  %s1 = inlined_call_operand.vmem [shape: bf16[2,8,32], index: 1, kind: input, shape index: {}]
  %s2 = inlined_call_operand.vmem [shape: bf16[32,64], index: 2, kind: input, shape index: {}]
  %s3 = inlined_call_operand.vmem [shape: f32[1,64], index: 3, kind: input, shape index: {}]
  %s4 = inlined_call_operand.vmem [shape: bf16[64,32], index: 4, kind: input, shape index: {}]
  %s5 = inlined_call_operand.vmem [shape: f32[1,32], index: 5, kind: input, shape index: {}]
  %s6 = inlined_call_operand.vmem [shape: f32[1,32], index: 6, kind: input, shape index: {}]
  %s7 = inlined_call_operand.vmem [shape: f32[1,32], index: 7, kind: input, shape index: {}]
  %s8 = inlined_call_operand.vmem [shape: f32[1,32], index: 8, kind: input, shape index: {}]
  %s9 = inlined_call_operand.vmem [shape: f32[1,32], index: 9, kind: input, shape index: {}]
  %s10 = inlined_call_operand.hbm [shape: bf16[2,8,32], index: 10, kind: output, shape index: {}]
  %s11 = sld [smem:[#allocation0]]
  $region73: #{encoder_layer_forward.3} parent=0
    _
  %s13 = ssub.s32 1, %s11
  %s14 = scalar_select 0, %s13, %s11
  $region1: #{encoder_layer_forward.3} parent=0
    #allocation2 [shape = 'u8[4096]{0}', space=vmem, size = 0x1000, scoped, tag = 'output window, operand 0']
    #allocation3 [shape = 's32[2]{0}', space=sflag, size = 0x8, scoped, tag = 'scoped memory for encoder_layer_forward.3']
    %15 = vsyncpa [#allocation3], 0
    %s16 = scalar_lea.sflag [#allocation3], 1
    %17 = vsyncpa %s16, 0
    loop: start=0, step=1, limit=4
    $region2: #{encoder_layer_forward.3} parent=1 // loop_pre_header
      _
    $region3: #{encoder_layer_forward.3} parent=1 // loop_header
      %s19 = sphi 0, %s23
      %p20 = scmp.ge.s32.totalorder %s19, 4
      %s26 = sphi 0, %s38
      %s27 = sphi 0, %s34
      %s28 = sphi 0, %s26
      %s29 = sphi 0, %s27
      %s30 = sphi 0, %s28
      %s31 = sphi 0, %s29
      %s43 = sphi 0, %s45
      %s46 = sphi 0, %s43
      %s47 = sphi 0, %s46
      %s63 = sphi 0, %s47
      %s71 = sphi 0, %s73
      %s74 = sphi 0, %s71
      %s75 = sphi 0, %s74
      %s91 = sphi 0, %s75
      %s95 = sphi 0, %s95
      %s97 = sphi 0, %s95
      %s98 = sphi 0, %s97
      %s112 = sphi 0, %s98
      %s116 = sphi 0, %s116
      %s118 = sphi 0, %s116
      %s119 = sphi 0, %s118
      %s133 = sphi 0, %s119
      %s137 = sphi 0, %s137
      %s139 = sphi 0, %s137
      %s140 = sphi 0, %s139
      %s154 = sphi 0, %s140
      %s158 = sphi 0, %s158
      %s160 = sphi 0, %s158
      %s161 = sphi 0, %s160
      %s175 = sphi 0, %s161
      %s179 = sphi 0, %s179
      %s181 = sphi 0, %s179
      %s182 = sphi 0, %s181
      %s196 = sphi 0, %s182
      %s200 = sphi 0, %s200
      %s202 = sphi 0, %s200
      %s203 = sphi 0, %s202
      %s217 = sphi 0, %s203
      %s221 = sphi 0, %s221
      %s223 = sphi 0, %s221
      %s224 = sphi 0, %s223
      %s238 = sphi 0, %s224
      %s242 = sphi 0, %s242
      %s244 = sphi 0, %s242
      %s245 = sphi 0, %s244
      %s259 = sphi 0, %s245
      %s267 = sphi 0, %s269
      %s270 = sphi 0, %s267
      %s271 = sphi 0, %s270
      %s287 = sphi 0, %s271
    $region4: #{encoder_layer_forward.3} parent=1 // loop_header_branch
      %22 = sbr.rel (%p20) target = $region8
    $region5: #{encoder_layer_forward.3} parent=1 // loop_body
      %s24 = ssub.s32 %s19, 1
      %s25 = ssub.s32 %s19, 2
      %s32 = sadd.s32 1, %s27
      %p33 = scmp.ge.s32.totalorder %s32, 1
      %s34 = scalar_select %p33, 0, %s32
      %s35 = sadd.s32 1, %s26
      %s36 = scalar_select %p33, %s35, %s26
      %p37 = scmp.ge.s32.totalorder %s36, 2
      %s38 = scalar_select %p37, 0, %s36
      %s39 = ssub.s32 %s26, %s38
      %s40 = ssub.s32 %s27, %s34
      %s41 = sor.u32 %s39, %s40
      %p42 = scmp.eq.s32.totalorder %s41, 0
      %s44 = sadd.s32 %s43, 1
      %s45 = scalar_select %p42, %s43, %s44
      %p48 = pneg %p42
      %p49 = scmp.eq.s32.totalorder %s19, 1
      %p50 = por %p48, %p49
      %p51 = scmp.ne.s32.totalorder %s43, %s46
      %p52 = scmp.eq.s32.totalorder %s19, 0
      %p53 = por %p51, %p52
      %p54 = scmp.ne.s32.totalorder %s43, %s46
      %p55 = scmp.eq.s32.totalorder %s24, 1
      %p56 = por %p54, %p55
      %p57 = scmp.ne.s32.totalorder %s46, %s47
      %p58 = scmp.eq.s32.totalorder %s24, 0
      %p59 = por %p57, %p58
      %p60 = scmp.ne.s32.totalorder %s46, %s47
      %p61 = scmp.eq.s32.totalorder %s25, 1
      %p62 = por %p60, %p61
      %p64 = scmp.ne.s32.totalorder %s47, %s63
      %p65 = scmp.eq.s32.totalorder %s25, 0
      %p66 = por %p64, %p65
      %s67 = ssub.s32 %s26, %s38
      %s68 = ssub.s32 %s27, %s34
      %s69 = sor.u32 %s67, %s68
      %p70 = scmp.eq.s32.totalorder %s69, 0
      %s72 = sadd.s32 %s71, 1
      %s73 = scalar_select %p70, %s71, %s72
      %p76 = pneg %p70
      %p77 = scmp.eq.s32.totalorder %s19, 1
      %p78 = por %p76, %p77
      %p79 = scmp.ne.s32.totalorder %s71, %s74
      %p80 = scmp.eq.s32.totalorder %s19, 0
      %p81 = por %p79, %p80
      %p82 = scmp.ne.s32.totalorder %s71, %s74
      %p83 = scmp.eq.s32.totalorder %s24, 1
      %p84 = por %p82, %p83
      %p85 = scmp.ne.s32.totalorder %s74, %s75
      %p86 = scmp.eq.s32.totalorder %s24, 0
      %p87 = por %p85, %p86
      %p88 = scmp.ne.s32.totalorder %s74, %s75
      %p89 = scmp.eq.s32.totalorder %s25, 1
      %p90 = por %p88, %p89
      %p92 = scmp.ne.s32.totalorder %s75, %s91
      %p93 = scmp.eq.s32.totalorder %s25, 0
      %p94 = por %p92, %p93
      %s96 = sadd.s32 %s95, 1
      %p99 = scmp.eq.s32.totalorder %s19, 1
      %p100 = scmp.ne.s32.totalorder %s95, %s97
      %p101 = scmp.eq.s32.totalorder %s19, 0
      %p102 = por %p100, %p101
      %p103 = scmp.ne.s32.totalorder %s95, %s97
      %p104 = scmp.eq.s32.totalorder %s24, 1
      %p105 = por %p103, %p104
      %p106 = scmp.ne.s32.totalorder %s97, %s98
      %p107 = scmp.eq.s32.totalorder %s24, 0
      %p108 = por %p106, %p107
      %p109 = scmp.ne.s32.totalorder %s97, %s98
      %p110 = scmp.eq.s32.totalorder %s25, 1
      %p111 = por %p109, %p110
      %p113 = scmp.ne.s32.totalorder %s98, %s112
      %p114 = scmp.eq.s32.totalorder %s25, 0
      %p115 = por %p113, %p114
      %s117 = sadd.s32 %s116, 1
      %p120 = scmp.eq.s32.totalorder %s19, 1
      %p121 = scmp.ne.s32.totalorder %s116, %s118
      %p122 = scmp.eq.s32.totalorder %s19, 0
      %p123 = por %p121, %p122
      %p124 = scmp.ne.s32.totalorder %s116, %s118
      %p125 = scmp.eq.s32.totalorder %s24, 1
      %p126 = por %p124, %p125
      %p127 = scmp.ne.s32.totalorder %s118, %s119
      %p128 = scmp.eq.s32.totalorder %s24, 0
      %p129 = por %p127, %p128
      %p130 = scmp.ne.s32.totalorder %s118, %s119
      %p131 = scmp.eq.s32.totalorder %s25, 1
      %p132 = por %p130, %p131
      %p134 = scmp.ne.s32.totalorder %s119, %s133
      %p135 = scmp.eq.s32.totalorder %s25, 0
      %p136 = por %p134, %p135
      %s138 = sadd.s32 %s137, 1
      %p141 = scmp.eq.s32.totalorder %s19, 1
      %p142 = scmp.ne.s32.totalorder %s137, %s139
      %p143 = scmp.eq.s32.totalorder %s19, 0
      %p144 = por %p142, %p143
      %p145 = scmp.ne.s32.totalorder %s137, %s139
      %p146 = scmp.eq.s32.totalorder %s24, 1
      %p147 = por %p145, %p146
      %p148 = scmp.ne.s32.totalorder %s139, %s140
      %p149 = scmp.eq.s32.totalorder %s24, 0
      %p150 = por %p148, %p149
      %p151 = scmp.ne.s32.totalorder %s139, %s140
      %p152 = scmp.eq.s32.totalorder %s25, 1
      %p153 = por %p151, %p152
      %p155 = scmp.ne.s32.totalorder %s140, %s154
      %p156 = scmp.eq.s32.totalorder %s25, 0
      %p157 = por %p155, %p156
      %s159 = sadd.s32 %s158, 1
      %p162 = scmp.eq.s32.totalorder %s19, 1
      %p163 = scmp.ne.s32.totalorder %s158, %s160
      %p164 = scmp.eq.s32.totalorder %s19, 0
      %p165 = por %p163, %p164
      %p166 = scmp.ne.s32.totalorder %s158, %s160
      %p167 = scmp.eq.s32.totalorder %s24, 1
      %p168 = por %p166, %p167
      %p169 = scmp.ne.s32.totalorder %s160, %s161
      %p170 = scmp.eq.s32.totalorder %s24, 0
      %p171 = por %p169, %p170
      %p172 = scmp.ne.s32.totalorder %s160, %s161
      %p173 = scmp.eq.s32.totalorder %s25, 1
      %p174 = por %p172, %p173
      %p176 = scmp.ne.s32.totalorder %s161, %s175
      %p177 = scmp.eq.s32.totalorder %s25, 0
      %p178 = por %p176, %p177
      %s180 = sadd.s32 %s179, 1
      %p183 = scmp.eq.s32.totalorder %s19, 1
      %p184 = scmp.ne.s32.totalorder %s179, %s181
      %p185 = scmp.eq.s32.totalorder %s19, 0
      %p186 = por %p184, %p185
      %p187 = scmp.ne.s32.totalorder %s179, %s181
      %p188 = scmp.eq.s32.totalorder %s24, 1
      %p189 = por %p187, %p188
      %p190 = scmp.ne.s32.totalorder %s181, %s182
      %p191 = scmp.eq.s32.totalorder %s24, 0
      %p192 = por %p190, %p191
      %p193 = scmp.ne.s32.totalorder %s181, %s182
      %p194 = scmp.eq.s32.totalorder %s25, 1
      %p195 = por %p193, %p194
      %p197 = scmp.ne.s32.totalorder %s182, %s196
      %p198 = scmp.eq.s32.totalorder %s25, 0
      %p199 = por %p197, %p198
      %s201 = sadd.s32 %s200, 1
      %p204 = scmp.eq.s32.totalorder %s19, 1
      %p205 = scmp.ne.s32.totalorder %s200, %s202
      %p206 = scmp.eq.s32.totalorder %s19, 0
      %p207 = por %p205, %p206
      %p208 = scmp.ne.s32.totalorder %s200, %s202
      %p209 = scmp.eq.s32.totalorder %s24, 1
      %p210 = por %p208, %p209
      %p211 = scmp.ne.s32.totalorder %s202, %s203
      %p212 = scmp.eq.s32.totalorder %s24, 0
      %p213 = por %p211, %p212
      %p214 = scmp.ne.s32.totalorder %s202, %s203
      %p215 = scmp.eq.s32.totalorder %s25, 1
      %p216 = por %p214, %p215
      %p218 = scmp.ne.s32.totalorder %s203, %s217
      %p219 = scmp.eq.s32.totalorder %s25, 0
      %p220 = por %p218, %p219
      %s222 = sadd.s32 %s221, 1
      %p225 = scmp.eq.s32.totalorder %s19, 1
      %p226 = scmp.ne.s32.totalorder %s221, %s223
      %p227 = scmp.eq.s32.totalorder %s19, 0
      %p228 = por %p226, %p227
      %p229 = scmp.ne.s32.totalorder %s221, %s223
      %p230 = scmp.eq.s32.totalorder %s24, 1
      %p231 = por %p229, %p230
      %p232 = scmp.ne.s32.totalorder %s223, %s224
      %p233 = scmp.eq.s32.totalorder %s24, 0
      %p234 = por %p232, %p233
      %p235 = scmp.ne.s32.totalorder %s223, %s224
      %p236 = scmp.eq.s32.totalorder %s25, 1
      %p237 = por %p235, %p236
      %p239 = scmp.ne.s32.totalorder %s224, %s238
      %p240 = scmp.eq.s32.totalorder %s25, 0
      %p241 = por %p239, %p240
      %s243 = sadd.s32 %s242, 1
      %p246 = scmp.eq.s32.totalorder %s19, 1
      %p247 = scmp.ne.s32.totalorder %s242, %s244
      %p248 = scmp.eq.s32.totalorder %s19, 0
      %p249 = por %p247, %p248
      %p250 = scmp.ne.s32.totalorder %s242, %s244
      %p251 = scmp.eq.s32.totalorder %s24, 1
      %p252 = por %p250, %p251
      %p253 = scmp.ne.s32.totalorder %s244, %s245
      %p254 = scmp.eq.s32.totalorder %s24, 0
      %p255 = por %p253, %p254
      %p256 = scmp.ne.s32.totalorder %s244, %s245
      %p257 = scmp.eq.s32.totalorder %s25, 1
      %p258 = por %p256, %p257
      %p260 = scmp.ne.s32.totalorder %s245, %s259
      %p261 = scmp.eq.s32.totalorder %s25, 0
      %p262 = por %p260, %p261
      %s263 = ssub.s32 %s26, %s38
      %s264 = ssub.s32 %s27, %s34
      %s265 = sor.u32 %s263, %s264
      %p266 = scmp.eq.s32.totalorder %s265, 0
      %s268 = sadd.s32 %s267, 1
      %s269 = scalar_select %p266, %s267, %s268
      %p272 = pneg %p266
      %p273 = scmp.eq.s32.totalorder %s19, 1
      %p274 = por %p272, %p273
      %p275 = scmp.ne.s32.totalorder %s267, %s270
      %p276 = scmp.eq.s32.totalorder %s19, 0
      %p277 = por %p275, %p276
      %p278 = scmp.ne.s32.totalorder %s267, %s270
      %p279 = scmp.eq.s32.totalorder %s24, 1
      %p280 = por %p278, %p279
      %p281 = scmp.ne.s32.totalorder %s270, %s271
      %p282 = scmp.eq.s32.totalorder %s24, 0
      %p283 = por %p281, %p282
      %p284 = scmp.ne.s32.totalorder %s270, %s271
      %p285 = scmp.eq.s32.totalorder %s25, 1
      %p286 = por %p284, %p285
      %p288 = scmp.ne.s32.totalorder %s271, %s287
      %p289 = scmp.eq.s32.totalorder %s25, 0
      %p290 = por %p288, %p289
      %p291 = scmp.le.s32.totalorder 1, %s19
      %p292 = scmp.lt.s32.totalorder %s19, 3
      %p293 = pnand %p291, %p292
      %p294 = pneg %p293
      // Predicated region
      $region9: #{encoder_layer_forward.3} parent=5 // pred_check
        _
      $region10: #{encoder_layer_forward.3} parent=5 // pred_check_branch
        %296 = sbr.rel (%p293) target = $region12
      $region11: #{encoder_layer_forward.3} parent=5 // pred_region
        %s297 = ssub.s32 %s19, 1
        // Predicated region
        $region13: #{encoder_layer_forward.3} parent=11 // pred_check
          %p298 = pneg %p108
        $region14: #{encoder_layer_forward.3} parent=11 // pred_check_branch
          %300 = sbr.rel (%p298) target = $region16
        $region15: #{encoder_layer_forward.3} parent=11 // pred_region
          _
        $region16: #{encoder_layer_forward.3} parent=11 // pred_fallthru
          _
        // Predicated region
        $region17: #{encoder_layer_forward.3} parent=11 // pred_check
          %p301 = pneg %p129
        $region18: #{encoder_layer_forward.3} parent=11 // pred_check_branch
          %303 = sbr.rel (%p301) target = $region20
        $region19: #{encoder_layer_forward.3} parent=11 // pred_region
          _
        $region20: #{encoder_layer_forward.3} parent=11 // pred_fallthru
          _
        // Predicated region
        $region21: #{encoder_layer_forward.3} parent=11 // pred_check
          %p304 = pneg %p150
        $region22: #{encoder_layer_forward.3} parent=11 // pred_check_branch
          %306 = sbr.rel (%p304) target = $region24
        $region23: #{encoder_layer_forward.3} parent=11 // pred_region
          _
        $region24: #{encoder_layer_forward.3} parent=11 // pred_fallthru
          _
        // Predicated region
        $region25: #{encoder_layer_forward.3} parent=11 // pred_check
          %p307 = pneg %p171
        $region26: #{encoder_layer_forward.3} parent=11 // pred_check_branch
          %309 = sbr.rel (%p307) target = $region28
        $region27: #{encoder_layer_forward.3} parent=11 // pred_region
          _
        $region28: #{encoder_layer_forward.3} parent=11 // pred_fallthru
          _
        // Predicated region
        $region29: #{encoder_layer_forward.3} parent=11 // pred_check
          %p310 = pneg %p192
        $region30: #{encoder_layer_forward.3} parent=11 // pred_check_branch
          %312 = sbr.rel (%p310) target = $region32
        $region31: #{encoder_layer_forward.3} parent=11 // pred_region
          _
        $region32: #{encoder_layer_forward.3} parent=11 // pred_fallthru
          _
        // Predicated region
        $region33: #{encoder_layer_forward.3} parent=11 // pred_check
          %p313 = pneg %p213
        $region34: #{encoder_layer_forward.3} parent=11 // pred_check_branch
          %315 = sbr.rel (%p313) target = $region36
        $region35: #{encoder_layer_forward.3} parent=11 // pred_region
          _
        $region36: #{encoder_layer_forward.3} parent=11 // pred_fallthru
          _
        // Predicated region
        $region37: #{encoder_layer_forward.3} parent=11 // pred_check
          %p316 = pneg %p234
        $region38: #{encoder_layer_forward.3} parent=11 // pred_check_branch
          %318 = sbr.rel (%p316) target = $region40
        $region39: #{encoder_layer_forward.3} parent=11 // pred_region
          _
        $region40: #{encoder_layer_forward.3} parent=11 // pred_fallthru
          _
        // Predicated region
        $region41: #{encoder_layer_forward.3} parent=11 // pred_check
          %p319 = pneg %p255
        $region42: #{encoder_layer_forward.3} parent=11 // pred_check_branch
          %321 = sbr.rel (%p319) target = $region44
        $region43: #{encoder_layer_forward.3} parent=11 // pred_region
          _
        $region44: #{encoder_layer_forward.3} parent=11 // pred_fallthru
          _
      $region12: #{encoder_layer_forward.3} parent=5 // pred_fallthru
        _
      %p322 = scmp.lt.s32.totalorder %s19, 2
      // Predicated region
      $region45: #{encoder_layer_forward.3} parent=5 // pred_check
        %p323 = pneg %p322
      $region46: #{encoder_layer_forward.3} parent=5 // pred_check_branch
        %325 = sbr.rel (%p323) target = $region48
      $region47: #{encoder_layer_forward.3} parent=5 // pred_region
        // Predicated region
        $region49: #{encoder_layer_forward.3} parent=47 // pred_check
          %p326 = pneg %p53
        $region50: #{encoder_layer_forward.3} parent=47 // pred_check_branch
          %328 = sbr.rel (%p326) target = $region52
        $region51: #{encoder_layer_forward.3} parent=47 // pred_region
          %p329 = scmp.lt.s32.totalorder %s26, 1
          %s330 = scalar_select %p329, %s26, 1
          %p331 = scmp.lt.s32.totalorder %s27, 0
          %s332 = scalar_select %p331, %s27, 0
          %s333 = sadd.s32 %s332, %s330
          %s334 = smul.addr %s333, 4
          %s335 = scalar_lea.vmem %s0, %s334
        $region52: #{encoder_layer_forward.3} parent=47 // pred_fallthru
          _
        // Predicated region
        $region53: #{encoder_layer_forward.3} parent=47 // pred_check
          %p336 = pneg %p81
        $region54: #{encoder_layer_forward.3} parent=47 // pred_check_branch
          %338 = sbr.rel (%p336) target = $region56
        $region55: #{encoder_layer_forward.3} parent=47 // pred_region
          %p339 = scmp.lt.s32.totalorder %s26, 1
          %s340 = scalar_select %p339, %s26, 1
          %p341 = scmp.lt.s32.totalorder %s27, 0
          %s342 = scalar_select %p341, %s27, 0
          %s343 = sadd.s32 %s342, %s340
          %s344 = smul.addr %s343, 4
          %s345 = scalar_lea.vmem %s1, %s344
        $region56: #{encoder_layer_forward.3} parent=47 // pred_fallthru
          _
      $region48: #{encoder_layer_forward.3} parent=5 // pred_fallthru
        _
      %p346 = scmp.le.s32.totalorder 1, %s19
      %p347 = scmp.lt.s32.totalorder %s19, 3
      %p348 = pnand %p346, %p347
      %p349 = pneg %p348
      // Predicated region
      $region57: #{encoder_layer_forward.3} parent=5 // pred_check
        _
      $region58: #{encoder_layer_forward.3} parent=5 // pred_check_branch
        %351 = sbr.rel (%p348) target = $region60
      $region59: #{encoder_layer_forward.3} parent=5 // pred_region
        %s352 = ssub.s32 %s19, 1
        %p353 = scmp.lt.s32.totalorder %s28, 1
        %s354 = scalar_select %p353, %s28, 1
        %p355 = scmp.lt.s32.totalorder %s29, 0
        %s356 = scalar_select %p355, %s29, 0
        %s357 = sadd.s32 %s356, %s354
        %s358 = smul.addr %s357, 4
        %s359 = scalar_lea.vmem %s0, %s358
        %p360 = pneg %p59
        %p361 = pneg %p56
        %p362 = scmp.lt.s32.totalorder %s28, 1
        %s363 = scalar_select %p362, %s28, 1
        %p364 = scmp.lt.s32.totalorder %s29, 0
        %s365 = scalar_select %p364, %s29, 0
        %s366 = sadd.s32 %s365, %s363
        %s367 = smul.addr %s366, 4
        %s368 = scalar_lea.vmem %s1, %s367
        %p369 = pneg %p87
        %p370 = pneg %p84
        %p371 = pneg %p108
        %p372 = pneg %p105
        %p373 = pneg %p129
        %p374 = pneg %p126
        %p375 = pneg %p150
        %p376 = pneg %p147
        %p377 = pneg %p171
        %p378 = pneg %p168
        %p379 = pneg %p192
        %p380 = pneg %p189
        %p381 = pneg %p213
        %p382 = pneg %p210
        %p383 = pneg %p234
        %p384 = pneg %p231
        %p385 = pneg %p255
        %p386 = pneg %p252
        %p387 = pneg %p283
        %p388 = pneg %p280
        %s389 = sand.u32 %s270, 1
        %s390 = scalar_lea.sflag [#allocation3], %s389
        %s391 = sand.u32 %s270, 1
        %s392 = smul.addr %s391, 4
        %s393 = scalar_lea.vmem [#allocation2], %s392
        %p394 = scmp.lt.s32.totalorder %s28, 1
        %s395 = scalar_select %p394, %s28, 1
        %p396 = scmp.lt.s32.totalorder %s29, 0
        %s397 = scalar_select %p396, %s29, 0
        %s398 = sadd.s32 %s397, %s395
        %s399 = smul.addr %s398, 4
        %s400 = scalar_lea.vmem %s0, %s399
        %p401 = scmp.lt.s32.totalorder %s28, 1
        %s402 = scalar_select %p401, %s28, 1
        %p403 = scmp.lt.s32.totalorder %s29, 0
        %s404 = scalar_select %p403, %s29, 0
        %s405 = sadd.s32 %s404, %s402
        %s406 = smul.addr %s405, 4
        %s407 = scalar_lea.vmem %s1, %s406
        %v409 = vld [vmem:[%s400] sm:$0xf]
        %v410 = vunpack.c.l.bf16 %v409
        %v411 = vld [vmem:[%s407] sm:$0xf]
        %v412 = vunpack.c.l.bf16 %v411
        %v413 = vadd.f32 %v410, %v412
        %vm414 = vcmask 261120
        %v415 = vsel %vm414, %v413, 0.0
        %416 = vadd.xlane.f32.xlu0 %v415
        %v417 = vpop.xlane.xlu0 %416
        %v418 = vrcp.pop 32.0
        %v419 = vmul.f32 32.0, %v418
        %v420 = vsub.f32 1.0, %v419
        %v421 = vmul.f32 %v418, %v420
        %v422 = vadd.f32 %v418, %v421
        %vm423 = vweird.f32 %v418
        %v424 = vsel %vm423, %v418, %v422
        %v425 = vmul.f32 %v417, %v424
        %v426 = vsub.f32 %v413, %v425
        %v427 = vmul.f32 %v426, %v426
        %v428 = vsel %vm414, %v427, 0.0
        %429 = vadd.xlane.f32.xlu0 %v428
        %v430 = vpop.xlane.xlu0 %429
        %v431 = vmul.f32 %v430, %v424
        %v432 = vadd.f32 %v431, 1e-05
        %v433 = vrsqrt.pop %v432
        %v434 = vmul.f32 %v433, %v432
        %v435 = vmul.f32 %v434, %v433
        %v436 = vmul.f32 0.5, %v435
        %v437 = vsub.f32 1.5, %v436
        %v438 = vmul.f32 %v433, %v437
        %vm439 = vweird.f32 %v432
        %vm440 = vweird.f32 %v433
        %vm441 = vmor %vm439, %vm440
        %v442 = vsel %vm441, %v433, %v438
        %v443 = vmul.f32 %v426, %v442
        %v444 = vld [vmem:[%s6] sm:$0x1]
        %v446 = vperm.slane %v444, 0
        %v448 = vmul.f32 %v443, %v446
        %v449 = vld [vmem:[%s7] sm:$0x1]
        %v451 = vperm.slane %v449, 0
        %v453 = vadd.f32 %v448, %v451
        %v454 = vpack.c.bf16 %v453, %v453
        %v455 = vld [vmem:[%s2] sm:$0xf]
        %v456 = vld [vmem:[%s2 + $0x4] sm:$0xf]
        %v457 = vld [vmem:[%s2 + $0x8] sm:$0xf]
        %v458 = vld [vmem:[%s2 + $0xc] sm:$0xf]
        %v459 = vld [vmem:[%s3] sm:$0x1]
        %v461 = vperm.slane %v459, 0
        %v467 = vunpack.c.l.b16 %v455
        %v468 = vunpack.c.l.b16 %v456
        %v469 = vunpack.c.l.b16 %v457
        %v470 = vunpack.c.l.b16 %v458
        %v471 = vpack.c.b16 %v468, %v467
        %v472 = vpack.c.b16 %v470, %v469
        %v476 = vsel %vm414, %v454, 0
        %478 = vmatpush.bf16.msra.mxu0 0
        %479 = vmatpush.bf16.msra.mxu0 0
        %480 = vmatpush.bf16.msra.mxu0 0
        %481 = vmatpush.bf16.msra.mxu0 0
        %482 = vmatpush.bf16.msra.mxu0 0
        %483 = vmatpush.bf16.msra.mxu0 0
        %484 = vmatpush.bf16.msra.mxu0 %v472
        %485 = vmatpush.bf16.msra.mxu0 %v471
        %486 = vmatmul.bf16.gmra.mxu0 %v476
        %v487 = vpop.f32.mrf.mxu0
        %v488 = vadd.f32 %v461, %v487
        %v489 = vpop.f32.mrf.mxu0
        %490 = vdwg.mxu0
        %v491 = vmax.f32 %v488, 0.0
        %v492 = vpack.c.bf16 %v491, %v491
        %v493 = vld [vmem:[%s4] sm:$0xf]
        %v494 = vld [vmem:[%s4 + $0x4] sm:$0xf]
        %v495 = vld [vmem:[%s4 + $0x8] sm:$0xf]
        %v496 = vld [vmem:[%s4 + $0xc] sm:$0xf]
        %v497 = vld [vmem:[%s4 + $0x10] sm:$0xf]
        %v498 = vld [vmem:[%s4 + $0x14] sm:$0xf]
        %v499 = vld [vmem:[%s4 + $0x18] sm:$0xf]
        %v500 = vld [vmem:[%s4 + $0x1c] sm:$0xf]
        %v501 = vld [vmem:[%s5] sm:$0x1]
        %v503 = vperm.slane %v501, 0
        %v513 = vunpack.c.l.b16 %v493
        %v514 = vunpack.c.l.b16 %v494
        %v515 = vunpack.c.l.b16 %v495
        %v516 = vunpack.c.l.b16 %v496
        %v517 = vunpack.c.l.b16 %v497
        %v518 = vunpack.c.l.b16 %v498
        %v519 = vunpack.c.l.b16 %v499
        %v520 = vunpack.c.l.b16 %v500
        %v521 = vpack.c.b16 %v514, %v513
        %v522 = vpack.c.b16 %v516, %v515
        %v523 = vpack.c.b16 %v518, %v517
        %v524 = vpack.c.b16 %v520, %v519
        %vm529 = vcmask 523264
        %v531 = vsel %vm529, %v492, 0
        %533 = vmatpush.bf16.msra.mxu0 0
        %534 = vmatpush.bf16.msra.mxu0 0
        %535 = vmatpush.bf16.msra.mxu0 0
        %536 = vmatpush.bf16.msra.mxu0 0
        %537 = vmatpush.bf16.msra.mxu0 %v524
        %538 = vmatpush.bf16.msra.mxu0 %v523
        %539 = vmatpush.bf16.msra.mxu0 %v522
        %540 = vmatpush.bf16.msra.mxu0 %v521
        %541 = vmatmul.bf16.gmra.mxu0 %v531
        %v542 = vpop.f32.mrf.mxu0
        %v543 = vadd.f32 %v503, %v542
        %v544 = vpop.f32.mrf.mxu0
        %545 = vdwg.mxu0
        %v546 = vadd.f32 %v453, %v543
        %v547 = vsel %vm414, %v546, 0.0
        %548 = vadd.xlane.f32.xlu0 %v547
        %v549 = vpop.xlane.xlu0 %548
        %v550 = vmul.f32 %v549, %v424
        %v551 = vsub.f32 %v546, %v550
        %v552 = vmul.f32 %v551, %v551
        %v553 = vsel %vm414, %v552, 0.0
        %554 = vadd.xlane.f32.xlu0 %v553
        %v555 = vpop.xlane.xlu0 %554
        %v556 = vmul.f32 %v555, %v424
        %v557 = vadd.f32 %v556, 1e-05
        %v558 = vrsqrt.pop %v557
        %v559 = vmul.f32 %v558, %v557
        %v560 = vmul.f32 %v559, %v558
        %v561 = vmul.f32 0.5, %v560
        %v562 = vsub.f32 1.5, %v561
        %v563 = vmul.f32 %v558, %v562
        %vm564 = vweird.f32 %v557
        %vm565 = vweird.f32 %v558
        %vm566 = vmor %vm564, %vm565
        %v567 = vsel %vm566, %v558, %v563
        %v568 = vmul.f32 %v551, %v567
        %v569 = vld [vmem:[%s8] sm:$0x1]
        %v571 = vperm.slane %v569, 0
        %v573 = vmul.f32 %v568, %v571
        %v574 = vld [vmem:[%s9] sm:$0x1]
        %v576 = vperm.slane %v574, 0
        %v578 = vadd.f32 %v573, %v576
        %v579 = vpack.c.bf16 %v578, %v578
        %vm580 = vcmask 257024
        %581 = vst.msk [vmem:[%s393] sm:$0xf] %vm580, %v579
        %s582 = sand.u32 %s270, 1
        %s583 = scalar_lea.sflag [#allocation3], %s582
        %s584 = sand.u32 %s270, 1
        %s585 = smul.addr %s584, 4
        %s586 = scalar_lea.vmem [#allocation2], %s585
        // Predicated region
        $region61: #{encoder_layer_forward.3} parent=59 // pred_check
          %p587 = pneg %p280
        $region62: #{encoder_layer_forward.3} parent=59 // pred_check_branch
          %589 = sbr.rel (%p587) target = $region64
        $region63: #{encoder_layer_forward.3} parent=59 // pred_region
          %591 = vsyncadd %s583, 0
          %s592 = sadd.s32 %s29, %s28
          %s593 = smul.addr %s592, 4
          %s594 = scalar_lea.hbm %s10, %s593
          %s596 = sshll.u32 %s586, 4
          %s597 = int_to_ptr.vmem [resolvable:$true] %s596
          %s598 = sshll.u32 %s594, 4
          %s599 = int_to_ptr.hbm [resolvable:$true] %s598
          %601 = dma.vmem_to_hbm [thread:$0]  %s597, 64, %s599, %s583
        $region64: #{encoder_layer_forward.3} parent=59 // pred_fallthru
          _
      $region60: #{encoder_layer_forward.3} parent=5 // pred_fallthru
        _
      %p602 = scmp.le.s32.totalorder 2, %s19
      // Predicated region
      $region65: #{encoder_layer_forward.3} parent=5 // pred_check
        %p603 = pneg %p602
      $region66: #{encoder_layer_forward.3} parent=5 // pred_check_branch
        %605 = sbr.rel (%p603) target = $region68
      $region67: #{encoder_layer_forward.3} parent=5 // pred_region
        %s606 = ssub.s32 %s19, 2
        // Predicated region
        $region69: #{encoder_layer_forward.3} parent=67 // pred_check
          %p607 = pneg %p286
        $region70: #{encoder_layer_forward.3} parent=67 // pred_check_branch
          %609 = sbr.rel (%p607) target = $region72
        $region71: #{encoder_layer_forward.3} parent=67 // pred_region
          %s610 = sand.u32 %s271, 1
          %s611 = scalar_lea.sflag [#allocation3], %s610
          %s612 = sand.u32 %s271, 1
          %s613 = smul.addr %s612, 4
          %s614 = scalar_lea.vmem [#allocation2], %s613
          %616 = dma.done %s611, 64
        $region72: #{encoder_layer_forward.3} parent=67 // pred_fallthru
          _
      $region68: #{encoder_layer_forward.3} parent=5 // pred_fallthru
        _
    $region6: #{encoder_layer_forward.3} parent=1 // loop_footer
      %s23 = sadd.s32 1, %s19
    $region7: #{encoder_layer_forward.3} parent=1 // loop_footer_branch
      %18 = sbr.rel target = $region3
    $region8: #{encoder_layer_forward.3} parent=1 // loop_exit
      _
    %617 = vsyncpa [#allocation3], 1
    %s618 = scalar_lea.sflag [#allocation3], 1
    %619 = vsyncpa %s618, 1

// kernel: encoder_layer_forward.2
$region0: #{encoder_layer_forward.2}
  #allocation0 [shape = 'u32[]', space=smem, size = 0x4, offset = 0x4, fixed_abs, tag = 'smem constant byte address 0x4 - core index']
  #allocation1 [shape = 'u32[72,128]{1,0:T(1,128)}', space=vmem, size = 0x9000, scoped, tag = 'internal scratch']
  #allocation2 [shape = 'f32[8,32]{1,0:T(8,128)}', space=vmem, size = 0x1000, scoped, tag = 'scratch operand']
  %s0 = inlined_call_operand.vmem [shape: bf16[2,8,32], index: 0, kind: input, shape index: {}, may-alias: {0,1}]
  %s1 = inlined_call_operand.vmem [shape: bf16[2,8,32], index: 1, kind: input, shape index: {}, may-alias: {0,1}]
  %s2 = inlined_call_operand.vmem [shape: bf16[4,32,8], index: 2, kind: input, shape index: {}]
  %s3 = inlined_call_operand.vmem [shape: bf16[4,32,8], index: 3, kind: input, shape index: {}]
  %s4 = inlined_call_operand.vmem [shape: bf16[4,32,8], index: 4, kind: input, shape index: {}]
  %s5 = inlined_call_operand.vmem [shape: f32[4,1,8], index: 5, kind: input, shape index: {}]
  %s6 = inlined_call_operand.vmem [shape: f32[4,1,8], index: 6, kind: input, shape index: {}]
  %s7 = inlined_call_operand.vmem [shape: f32[4,1,8], index: 7, kind: input, shape index: {}]
  %s8 = inlined_call_operand.vmem [shape: bf16[4,8,32], index: 8, kind: input, shape index: {}]
  %s9 = inlined_call_operand.vmem [shape: f32[1,32], index: 9, kind: input, shape index: {}]
  %s10 = inlined_call_operand.vmem [shape: bf16[2,8,32], index: 10, kind: output, shape index: {0}]
  %s11 = inlined_call_operand.hbm [shape: bf16[2,4,8,8], index: 11, kind: output, shape index: {1}]
  %12 = xla_tuple %s10, %s11
  %s13 = sld [smem:[#allocation0]]
  $region89: #{encoder_layer_forward.2} parent=0
    _
  %s15 = ssub.s32 1, %s13
  %s16 = scalar_select 0, %s15, %s13
  $region1: #{encoder_layer_forward.2} parent=0
    #allocation3 [shape = 'u8[4096]{0}', space=vmem, size = 0x1000, scoped, tag = 'output window, operand 1']
    #allocation4 [shape = 's32[2]{0}', space=sflag, size = 0x8, scoped, tag = 'scoped memory for encoder_layer_forward.2']
    %17 = vsyncpa [#allocation4], 0
    %s18 = scalar_lea.sflag [#allocation4], 1
    %19 = vsyncpa %s18, 0
    loop: start=0, step=1, limit=10
    $region2: #{encoder_layer_forward.2} parent=1 // loop_pre_header
      _
    $region3: #{encoder_layer_forward.2} parent=1 // loop_header
      %s21 = sphi 0, %s25
      %p22 = scmp.ge.s32.totalorder %s21, 10
      %s28 = sphi 0, %s47
      %s29 = sphi 0, %s43
      %s30 = sphi 0, %s39
      %s31 = sphi 0, %s28
      %s32 = sphi 0, %s29
      %s33 = sphi 0, %s30
      %s34 = sphi 0, %s31
      %s35 = sphi 0, %s32
      %s36 = sphi 0, %s33
      %s52 = sphi 0, %s54
      %s55 = sphi 0, %s52
      %s56 = sphi 0, %s55
      %s72 = sphi 0, %s56
      %s78 = sphi 0, %s80
      %s81 = sphi 0, %s78
      %s82 = sphi 0, %s81
      %s98 = sphi 0, %s82
      %s104 = sphi 0, %s106
      %s107 = sphi 0, %s104
      %s108 = sphi 0, %s107
      %s124 = sphi 0, %s108
      %s130 = sphi 0, %s132
      %s133 = sphi 0, %s130
      %s134 = sphi 0, %s133
      %s150 = sphi 0, %s134
      %s156 = sphi 0, %s158
      %s159 = sphi 0, %s156
      %s160 = sphi 0, %s159
      %s176 = sphi 0, %s160
      %s182 = sphi 0, %s184
      %s185 = sphi 0, %s182
      %s186 = sphi 0, %s185
      %s202 = sphi 0, %s186
      %s208 = sphi 0, %s210
      %s211 = sphi 0, %s208
      %s212 = sphi 0, %s211
      %s228 = sphi 0, %s212
      %s234 = sphi 0, %s236
      %s237 = sphi 0, %s234
      %s238 = sphi 0, %s237
      %s254 = sphi 0, %s238
      %s260 = sphi 0, %s262
      %s263 = sphi 0, %s260
      %s264 = sphi 0, %s263
      %s280 = sphi 0, %s264
      %s284 = sphi 0, %s284
      %s286 = sphi 0, %s284
      %s287 = sphi 0, %s286
      %s301 = sphi 0, %s287
      %s309 = sphi 0, %s311
      %s312 = sphi 0, %s309
      %s313 = sphi 0, %s312
      %s329 = sphi 0, %s313
      %s339 = sphi 0, %s341
      %s342 = sphi 0, %s339
      %s343 = sphi 0, %s342
      %s359 = sphi 0, %s343
    $region4: #{encoder_layer_forward.2} parent=1 // loop_header_branch
      %24 = sbr.rel (%p22) target = $region8
    $region5: #{encoder_layer_forward.2} parent=1 // loop_body
      %s26 = ssub.s32 %s21, 1
      %s27 = ssub.s32 %s21, 2
      %s37 = sadd.s32 1, %s30
      %p38 = scmp.ge.s32.totalorder %s37, 4
      %s39 = scalar_select %p38, 0, %s37
      %s40 = sadd.s32 1, %s29
      %s41 = scalar_select %p38, %s40, %s29
      %p42 = scmp.ge.s32.totalorder %s41, 1
      %s43 = scalar_select %p42, 0, %s41
      %s44 = sadd.s32 1, %s28
      %s45 = scalar_select %p42, %s44, %s28
      %p46 = scmp.ge.s32.totalorder %s45, 2
      %s47 = scalar_select %p46, 0, %s45
      %s48 = ssub.s32 %s28, %s47
      %s49 = ssub.s32 %s29, %s43
      %s50 = sor.u32 %s48, %s49
      %p51 = scmp.eq.s32.totalorder %s50, 0
      %s53 = sadd.s32 %s52, 1
      %s54 = scalar_select %p51, %s52, %s53
      %p57 = pneg %p51
      %p58 = scmp.eq.s32.totalorder %s21, 7
      %p59 = por %p57, %p58
      %p60 = scmp.ne.s32.totalorder %s52, %s55
      %p61 = scmp.eq.s32.totalorder %s21, 0
      %p62 = por %p60, %p61
      %p63 = scmp.ne.s32.totalorder %s52, %s55
      %p64 = scmp.eq.s32.totalorder %s26, 7
      %p65 = por %p63, %p64
      %p66 = scmp.ne.s32.totalorder %s55, %s56
      %p67 = scmp.eq.s32.totalorder %s26, 0
      %p68 = por %p66, %p67
      %p69 = scmp.ne.s32.totalorder %s55, %s56
      %p70 = scmp.eq.s32.totalorder %s27, 7
      %p71 = por %p69, %p70
      %p73 = scmp.ne.s32.totalorder %s56, %s72
      %p74 = scmp.eq.s32.totalorder %s27, 0
      %p75 = por %p73, %p74
      %s76 = ssub.s32 %s28, %s47
      %p77 = scmp.eq.s32.totalorder %s76, 0
      %s79 = sadd.s32 %s78, 1
      %s80 = scalar_select %p77, %s78, %s79
      %p83 = pneg %p77
      %p84 = scmp.eq.s32.totalorder %s21, 7
      %p85 = por %p83, %p84
      %p86 = scmp.ne.s32.totalorder %s78, %s81
      %p87 = scmp.eq.s32.totalorder %s21, 0
      %p88 = por %p86, %p87
      %p89 = scmp.ne.s32.totalorder %s78, %s81
      %p90 = scmp.eq.s32.totalorder %s26, 7
      %p91 = por %p89, %p90
      %p92 = scmp.ne.s32.totalorder %s81, %s82
      %p93 = scmp.eq.s32.totalorder %s26, 0
      %p94 = por %p92, %p93
      %p95 = scmp.ne.s32.totalorder %s81, %s82
      %p96 = scmp.eq.s32.totalorder %s27, 7
      %p97 = por %p95, %p96
      %p99 = scmp.ne.s32.totalorder %s82, %s98
      %p100 = scmp.eq.s32.totalorder %s27, 0
      %p101 = por %p99, %p100
      %s102 = ssub.s32 %s30, %s39
      %p103 = scmp.eq.s32.totalorder %s102, 0
      %s105 = sadd.s32 %s104, 1
      %s106 = scalar_select %p103, %s104, %s105
      %p109 = pneg %p103
      %p110 = scmp.eq.s32.totalorder %s21, 7
      %p111 = por %p109, %p110
      %p112 = scmp.ne.s32.totalorder %s104, %s107
      %p113 = scmp.eq.s32.totalorder %s21, 0
      %p114 = por %p112, %p113
      %p115 = scmp.ne.s32.totalorder %s104, %s107
      %p116 = scmp.eq.s32.totalorder %s26, 7
      %p117 = por %p115, %p116
      %p118 = scmp.ne.s32.totalorder %s107, %s108
      %p119 = scmp.eq.s32.totalorder %s26, 0
      %p120 = por %p118, %p119
      %p121 = scmp.ne.s32.totalorder %s107, %s108
      %p122 = scmp.eq.s32.totalorder %s27, 7
      %p123 = por %p121, %p122
      %p125 = scmp.ne.s32.totalorder %s108, %s124
      %p126 = scmp.eq.s32.totalorder %s27, 0
      %p127 = por %p125, %p126
      %s128 = ssub.s32 %s30, %s39
      %p129 = scmp.eq.s32.totalorder %s128, 0
      %s131 = sadd.s32 %s130, 1
      %s132 = scalar_select %p129, %s130, %s131
      %p135 = pneg %p129
      %p136 = scmp.eq.s32.totalorder %s21, 7
      %p137 = por %p135, %p136
      %p138 = scmp.ne.s32.totalorder %s130, %s133
      %p139 = scmp.eq.s32.totalorder %s21, 0
      %p140 = por %p138, %p139
      %p141 = scmp.ne.s32.totalorder %s130, %s133
      %p142 = scmp.eq.s32.totalorder %s26, 7
      %p143 = por %p141, %p142
      %p144 = scmp.ne.s32.totalorder %s133, %s134
      %p145 = scmp.eq.s32.totalorder %s26, 0
      %p146 = por %p144, %p145
      %p147 = scmp.ne.s32.totalorder %s133, %s134
      %p148 = scmp.eq.s32.totalorder %s27, 7
      %p149 = por %p147, %p148
      %p151 = scmp.ne.s32.totalorder %s134, %s150
      %p152 = scmp.eq.s32.totalorder %s27, 0
      %p153 = por %p151, %p152
      %s154 = ssub.s32 %s30, %s39
      %p155 = scmp.eq.s32.totalorder %s154, 0
      %s157 = sadd.s32 %s156, 1
      %s158 = scalar_select %p155, %s156, %s157
      %p161 = pneg %p155
      %p162 = scmp.eq.s32.totalorder %s21, 7
      %p163 = por %p161, %p162
      %p164 = scmp.ne.s32.totalorder %s156, %s159
      %p165 = scmp.eq.s32.totalorder %s21, 0
      %p166 = por %p164, %p165
      %p167 = scmp.ne.s32.totalorder %s156, %s159
      %p168 = scmp.eq.s32.totalorder %s26, 7
      %p169 = por %p167, %p168
      %p170 = scmp.ne.s32.totalorder %s159, %s160
      %p171 = scmp.eq.s32.totalorder %s26, 0
      %p172 = por %p170, %p171
      %p173 = scmp.ne.s32.totalorder %s159, %s160
      %p174 = scmp.eq.s32.totalorder %s27, 7
      %p175 = por %p173, %p174
      %p177 = scmp.ne.s32.totalorder %s160, %s176
      %p178 = scmp.eq.s32.totalorder %s27, 0
      %p179 = por %p177, %p178
      %s180 = ssub.s32 %s30, %s39
      %p181 = scmp.eq.s32.totalorder %s180, 0
      %s183 = sadd.s32 %s182, 1
      %s184 = scalar_select %p181, %s182, %s183
      %p187 = pneg %p181
      %p188 = scmp.eq.s32.totalorder %s21, 7
      %p189 = por %p187, %p188
      %p190 = scmp.ne.s32.totalorder %s182, %s185
      %p191 = scmp.eq.s32.totalorder %s21, 0
      %p192 = por %p190, %p191
      %p193 = scmp.ne.s32.totalorder %s182, %s185
      %p194 = scmp.eq.s32.totalorder %s26, 7
      %p195 = por %p193, %p194
      %p196 = scmp.ne.s32.totalorder %s185, %s186
      %p197 = scmp.eq.s32.totalorder %s26, 0
      %p198 = por %p196, %p197
      %p199 = scmp.ne.s32.totalorder %s185, %s186
      %p200 = scmp.eq.s32.totalorder %s27, 7
      %p201 = por %p199, %p200
      %p203 = scmp.ne.s32.totalorder %s186, %s202
      %p204 = scmp.eq.s32.totalorder %s27, 0
      %p205 = por %p203, %p204
      %s206 = ssub.s32 %s30, %s39
      %p207 = scmp.eq.s32.totalorder %s206, 0
      %s209 = sadd.s32 %s208, 1
      %s210 = scalar_select %p207, %s208, %s209
      %p213 = pneg %p207
      %p214 = scmp.eq.s32.totalorder %s21, 7
      %p215 = por %p213, %p214
      %p216 = scmp.ne.s32.totalorder %s208, %s211
      %p217 = scmp.eq.s32.totalorder %s21, 0
      %p218 = por %p216, %p217
      %p219 = scmp.ne.s32.totalorder %s208, %s211
      %p220 = scmp.eq.s32.totalorder %s26, 7
      %p221 = por %p219, %p220
      %p222 = scmp.ne.s32.totalorder %s211, %s212
      %p223 = scmp.eq.s32.totalorder %s26, 0
      %p224 = por %p222, %p223
      %p225 = scmp.ne.s32.totalorder %s211, %s212
      %p226 = scmp.eq.s32.totalorder %s27, 7
      %p227 = por %p225, %p226
      %p229 = scmp.ne.s32.totalorder %s212, %s228
      %p230 = scmp.eq.s32.totalorder %s27, 0
      %p231 = por %p229, %p230
      %s232 = ssub.s32 %s30, %s39
      %p233 = scmp.eq.s32.totalorder %s232, 0
      %s235 = sadd.s32 %s234, 1
      %s236 = scalar_select %p233, %s234, %s235
      %p239 = pneg %p233
      %p240 = scmp.eq.s32.totalorder %s21, 7
      %p241 = por %p239, %p240
      %p242 = scmp.ne.s32.totalorder %s234, %s237
      %p243 = scmp.eq.s32.totalorder %s21, 0
      %p244 = por %p242, %p243
      %p245 = scmp.ne.s32.totalorder %s234, %s237
      %p246 = scmp.eq.s32.totalorder %s26, 7
      %p247 = por %p245, %p246
      %p248 = scmp.ne.s32.totalorder %s237, %s238
      %p249 = scmp.eq.s32.totalorder %s26, 0
      %p250 = por %p248, %p249
      %p251 = scmp.ne.s32.totalorder %s237, %s238
      %p252 = scmp.eq.s32.totalorder %s27, 7
      %p253 = por %p251, %p252
      %p255 = scmp.ne.s32.totalorder %s238, %s254
      %p256 = scmp.eq.s32.totalorder %s27, 0
      %p257 = por %p255, %p256
      %s258 = ssub.s32 %s30, %s39
      %p259 = scmp.eq.s32.totalorder %s258, 0
      %s261 = sadd.s32 %s260, 1
      %s262 = scalar_select %p259, %s260, %s261
      %p265 = pneg %p259
      %p266 = scmp.eq.s32.totalorder %s21, 7
      %p267 = por %p265, %p266
      %p268 = scmp.ne.s32.totalorder %s260, %s263
      %p269 = scmp.eq.s32.totalorder %s21, 0
      %p270 = por %p268, %p269
      %p271 = scmp.ne.s32.totalorder %s260, %s263
      %p272 = scmp.eq.s32.totalorder %s26, 7
      %p273 = por %p271, %p272
      %p274 = scmp.ne.s32.totalorder %s263, %s264
      %p275 = scmp.eq.s32.totalorder %s26, 0
      %p276 = por %p274, %p275
      %p277 = scmp.ne.s32.totalorder %s263, %s264
      %p278 = scmp.eq.s32.totalorder %s27, 7
      %p279 = por %p277, %p278
      %p281 = scmp.ne.s32.totalorder %s264, %s280
      %p282 = scmp.eq.s32.totalorder %s27, 0
      %p283 = por %p281, %p282
      %s285 = sadd.s32 %s284, 1
      %p288 = scmp.eq.s32.totalorder %s21, 7
      %p289 = scmp.ne.s32.totalorder %s284, %s286
      %p290 = scmp.eq.s32.totalorder %s21, 0
      %p291 = por %p289, %p290
      %p292 = scmp.ne.s32.totalorder %s284, %s286
      %p293 = scmp.eq.s32.totalorder %s26, 7
      %p294 = por %p292, %p293
      %p295 = scmp.ne.s32.totalorder %s286, %s287
      %p296 = scmp.eq.s32.totalorder %s26, 0
      %p297 = por %p295, %p296
      %p298 = scmp.ne.s32.totalorder %s286, %s287
      %p299 = scmp.eq.s32.totalorder %s27, 7
      %p300 = por %p298, %p299
      %p302 = scmp.ne.s32.totalorder %s287, %s301
      %p303 = scmp.eq.s32.totalorder %s27, 0
      %p304 = por %p302, %p303
      %s305 = ssub.s32 %s28, %s47
      %s306 = ssub.s32 %s29, %s43
      %s307 = sor.u32 %s305, %s306
      %p308 = scmp.eq.s32.totalorder %s307, 0
      %s310 = sadd.s32 %s309, 1
      %s311 = scalar_select %p308, %s309, %s310
      %p314 = pneg %p308
      %p315 = scmp.eq.s32.totalorder %s21, 7
      %p316 = por %p314, %p315
      %p317 = scmp.ne.s32.totalorder %s309, %s312
      %p318 = scmp.eq.s32.totalorder %s21, 0
      %p319 = por %p317, %p318
      %p320 = scmp.ne.s32.totalorder %s309, %s312
      %p321 = scmp.eq.s32.totalorder %s26, 7
      %p322 = por %p320, %p321
      %p323 = scmp.ne.s32.totalorder %s312, %s313
      %p324 = scmp.eq.s32.totalorder %s26, 0
      %p325 = por %p323, %p324
      %p326 = scmp.ne.s32.totalorder %s312, %s313
      %p327 = scmp.eq.s32.totalorder %s27, 7
      %p328 = por %p326, %p327
      %p330 = scmp.ne.s32.totalorder %s313, %s329
      %p331 = scmp.eq.s32.totalorder %s27, 0
      %p332 = por %p330, %p331
      %s333 = ssub.s32 %s28, %s47
      %s334 = ssub.s32 %s30, %s39
      %s335 = sor.u32 %s333, %s334
      %s336 = ssub.s32 %s29, %s43
      %s337 = sor.u32 %s335, %s336
      %p338 = scmp.eq.s32.totalorder %s337, 0
      %s340 = sadd.s32 %s339, 1
      %s341 = scalar_select %p338, %s339, %s340
      %p344 = pneg %p338
      %p345 = scmp.eq.s32.totalorder %s21, 7
      %p346 = por %p344, %p345
      %p347 = scmp.ne.s32.totalorder %s339, %s342
      %p348 = scmp.eq.s32.totalorder %s21, 0
      %p349 = por %p347, %p348
      %p350 = scmp.ne.s32.totalorder %s339, %s342
      %p351 = scmp.eq.s32.totalorder %s26, 7
      %p352 = por %p350, %p351
      %p353 = scmp.ne.s32.totalorder %s342, %s343
      %p354 = scmp.eq.s32.totalorder %s26, 0
      %p355 = por %p353, %p354
      %p356 = scmp.ne.s32.totalorder %s342, %s343
      %p357 = scmp.eq.s32.totalorder %s27, 7
      %p358 = por %p356, %p357
      %p360 = scmp.ne.s32.totalorder %s343, %s359
      %p361 = scmp.eq.s32.totalorder %s27, 0
      %p362 = por %p360, %p361
      %p363 = scmp.le.s32.totalorder 1, %s21
      %p364 = scmp.lt.s32.totalorder %s21, 9
      %p365 = pnand %p363, %p364
      %p366 = pneg %p365
      // Predicated region
      $region9: #{encoder_layer_forward.2} parent=5 // pred_check
        _
      $region10: #{encoder_layer_forward.2} parent=5 // pred_check_branch
        %368 = sbr.rel (%p365) target = $region12
      $region11: #{encoder_layer_forward.2} parent=5 // pred_region
        %s369 = ssub.s32 %s21, 1
        // Predicated region
        $region13: #{encoder_layer_forward.2} parent=11 // pred_check
          %p370 = pneg %p297
        $region14: #{encoder_layer_forward.2} parent=11 // pred_check_branch
          %372 = sbr.rel (%p370) target = $region16
        $region15: #{encoder_layer_forward.2} parent=11 // pred_region
          _
        $region16: #{encoder_layer_forward.2} parent=11 // pred_fallthru
          _
      $region12: #{encoder_layer_forward.2} parent=5 // pred_fallthru
        _
      %p373 = scmp.lt.s32.totalorder %s21, 8
      // Predicated region
      $region17: #{encoder_layer_forward.2} parent=5 // pred_check
        %p374 = pneg %p373
      $region18: #{encoder_layer_forward.2} parent=5 // pred_check_branch
        %376 = sbr.rel (%p374) target = $region20
      $region19: #{encoder_layer_forward.2} parent=5 // pred_region
        // Predicated region
        $region21: #{encoder_layer_forward.2} parent=19 // pred_check
          %p377 = pneg %p62
        $region22: #{encoder_layer_forward.2} parent=19 // pred_check_branch
          %379 = sbr.rel (%p377) target = $region24
        $region23: #{encoder_layer_forward.2} parent=19 // pred_region
          %p380 = scmp.lt.s32.totalorder %s28, 1
          %s381 = scalar_select %p380, %s28, 1
          %p382 = scmp.lt.s32.totalorder %s29, 0
          %s383 = scalar_select %p382, %s29, 0
          %s384 = sadd.s32 %s383, %s381
          %s385 = smul.addr %s384, 4
          %s386 = scalar_lea.vmem %s0, %s385
        $region24: #{encoder_layer_forward.2} parent=19 // pred_fallthru
          _
        // Predicated region
        $region25: #{encoder_layer_forward.2} parent=19 // pred_check
          %p387 = pneg %p88
        $region26: #{encoder_layer_forward.2} parent=19 // pred_check_branch
          %389 = sbr.rel (%p387) target = $region28
        $region27: #{encoder_layer_forward.2} parent=19 // pred_region
          %p390 = scmp.lt.s32.totalorder %s28, 1
          %s391 = scalar_select %p390, %s28, 1
          %s392 = smul.addr %s391, 4
          %s393 = scalar_lea.vmem %s1, %s392
        $region28: #{encoder_layer_forward.2} parent=19 // pred_fallthru
          _
        // Predicated region
        $region29: #{encoder_layer_forward.2} parent=19 // pred_check
          %p394 = pneg %p114
        $region30: #{encoder_layer_forward.2} parent=19 // pred_check_branch
          %396 = sbr.rel (%p394) target = $region32
        $region31: #{encoder_layer_forward.2} parent=19 // pred_region
          %p397 = scmp.lt.s32.totalorder %s30, 3
          %s398 = scalar_select %p397, %s30, 3
          %s399 = smul.addr %s398, 4
          %s400 = smul.addr %s399, 4
          %s401 = scalar_lea.vmem %s2, %s400
        $region32: #{encoder_layer_forward.2} parent=19 // pred_fallthru
          _
        // Predicated region
        $region33: #{encoder_layer_forward.2} parent=19 // pred_check
          %p402 = pneg %p140
        $region34: #{encoder_layer_forward.2} parent=19 // pred_check_branch
          %404 = sbr.rel (%p402) target = $region36
        $region35: #{encoder_layer_forward.2} parent=19 // pred_region
          %p405 = scmp.lt.s32.totalorder %s30, 3
          %s406 = scalar_select %p405, %s30, 3
          %s407 = smul.addr %s406, 4
          %s408 = smul.addr %s407, 4
          %s409 = scalar_lea.vmem %s3, %s408
        $region36: #{encoder_layer_forward.2} parent=19 // pred_fallthru
          _
        // Predicated region
        $region37: #{encoder_layer_forward.2} parent=19 // pred_check
          %p410 = pneg %p166
        $region38: #{encoder_layer_forward.2} parent=19 // pred_check_branch
          %412 = sbr.rel (%p410) target = $region40
        $region39: #{encoder_layer_forward.2} parent=19 // pred_region
          %p413 = scmp.lt.s32.totalorder %s30, 3
          %s414 = scalar_select %p413, %s30, 3
          %s415 = smul.addr %s414, 4
          %s416 = smul.addr %s415, 4
          %s417 = scalar_lea.vmem %s4, %s416
        $region40: #{encoder_layer_forward.2} parent=19 // pred_fallthru
          _
        // Predicated region
        $region41: #{encoder_layer_forward.2} parent=19 // pred_check
          %p418 = pneg %p192
        $region42: #{encoder_layer_forward.2} parent=19 // pred_check_branch
          %420 = sbr.rel (%p418) target = $region44
        $region43: #{encoder_layer_forward.2} parent=19 // pred_region
          %p421 = scmp.lt.s32.totalorder %s30, 3
          %s422 = scalar_select %p421, %s30, 3
          %s423 = scalar_lea.vmem %s5, %s422
        $region44: #{encoder_layer_forward.2} parent=19 // pred_fallthru
          _
        // Predicated region
        $region45: #{encoder_layer_forward.2} parent=19 // pred_check
          %p424 = pneg %p218
        $region46: #{encoder_layer_forward.2} parent=19 // pred_check_branch
          %426 = sbr.rel (%p424) target = $region48
        $region47: #{encoder_layer_forward.2} parent=19 // pred_region
          %p427 = scmp.lt.s32.totalorder %s30, 3
          %s428 = scalar_select %p427, %s30, 3
          %s429 = scalar_lea.vmem %s6, %s428
        $region48: #{encoder_layer_forward.2} parent=19 // pred_fallthru
          _
        // Predicated region
        $region49: #{encoder_layer_forward.2} parent=19 // pred_check
          %p430 = pneg %p244
        $region50: #{encoder_layer_forward.2} parent=19 // pred_check_branch
          %432 = sbr.rel (%p430) target = $region52
        $region51: #{encoder_layer_forward.2} parent=19 // pred_region
          %p433 = scmp.lt.s32.totalorder %s30, 3
          %s434 = scalar_select %p433, %s30, 3
          %s435 = scalar_lea.vmem %s7, %s434
        $region52: #{encoder_layer_forward.2} parent=19 // pred_fallthru
          _
        // Predicated region
        $region53: #{encoder_layer_forward.2} parent=19 // pred_check
          %p436 = pneg %p270
        $region54: #{encoder_layer_forward.2} parent=19 // pred_check_branch
          %438 = sbr.rel (%p436) target = $region56
        $region55: #{encoder_layer_forward.2} parent=19 // pred_region
          %p439 = scmp.lt.s32.totalorder %s30, 3
          %s440 = scalar_select %p439, %s30, 3
          %s441 = smul.addr %s440, 4
          %s442 = scalar_lea.vmem %s8, %s441
        $region56: #{encoder_layer_forward.2} parent=19 // pred_fallthru
          _
      $region20: #{encoder_layer_forward.2} parent=5 // pred_fallthru
        _
      %p443 = scmp.le.s32.totalorder 1, %s21
      %p444 = scmp.lt.s32.totalorder %s21, 9
      %p445 = pnand %p443, %p444
      %p446 = pneg %p445
      // Predicated region
      $region57: #{encoder_layer_forward.2} parent=5 // pred_check
        _
      $region58: #{encoder_layer_forward.2} parent=5 // pred_check_branch
        %448 = sbr.rel (%p445) target = $region60
      $region59: #{encoder_layer_forward.2} parent=5 // pred_region
        %s449 = ssub.s32 %s21, 1
        %p450 = scmp.lt.s32.totalorder %s31, 1
        %s451 = scalar_select %p450, %s31, 1
        %p452 = scmp.lt.s32.totalorder %s32, 0
        %s453 = scalar_select %p452, %s32, 0
        %s454 = sadd.s32 %s453, %s451
        %s455 = smul.addr %s454, 4
        %s456 = scalar_lea.vmem %s0, %s455
        %p457 = pneg %p68
        %p458 = pneg %p65
        %p459 = scmp.lt.s32.totalorder %s31, 1
        %s460 = scalar_select %p459, %s31, 1
        %s461 = smul.addr %s460, 4
        %s462 = scalar_lea.vmem %s1, %s461
        %p463 = pneg %p94
        %p464 = pneg %p91
        %p465 = scmp.lt.s32.totalorder %s33, 3
        %s466 = scalar_select %p465, %s33, 3
        %s467 = smul.addr %s466, 4
        %s468 = smul.addr %s467, 4
        %s469 = scalar_lea.vmem %s2, %s468
        %p470 = pneg %p120
        %p471 = pneg %p117
        %p472 = scmp.lt.s32.totalorder %s33, 3
        %s473 = scalar_select %p472, %s33, 3
        %s474 = smul.addr %s473, 4
        %s475 = smul.addr %s474, 4
        %s476 = scalar_lea.vmem %s3, %s475
        %p477 = pneg %p146
        %p478 = pneg %p143
        %p479 = scmp.lt.s32.totalorder %s33, 3
        %s480 = scalar_select %p479, %s33, 3
        %s481 = smul.addr %s480, 4
        %s482 = smul.addr %s481, 4
        %s483 = scalar_lea.vmem %s4, %s482
        %p484 = pneg %p172
        %p485 = pneg %p169
        %p486 = scmp.lt.s32.totalorder %s33, 3
        %s487 = scalar_select %p486, %s33, 3
        %s488 = scalar_lea.vmem %s5, %s487
        %p489 = pneg %p198
        %p490 = pneg %p195
        %p491 = scmp.lt.s32.totalorder %s33, 3
        %s492 = scalar_select %p491, %s33, 3
        %s493 = scalar_lea.vmem %s6, %s492
        %p494 = pneg %p224
        %p495 = pneg %p221
        %p496 = scmp.lt.s32.totalorder %s33, 3
        %s497 = scalar_select %p496, %s33, 3
        %s498 = scalar_lea.vmem %s7, %s497
        %p499 = pneg %p250
        %p500 = pneg %p247
        %p501 = scmp.lt.s32.totalorder %s33, 3
        %s502 = scalar_select %p501, %s33, 3
        %s503 = smul.addr %s502, 4
        %s504 = scalar_lea.vmem %s8, %s503
        %p505 = pneg %p276
        %p506 = pneg %p273
        %p507 = pneg %p297
        %p508 = pneg %p294
        %p509 = pneg %p325
        %p510 = pneg %p322
        %p511 = scmp.lt.s32.totalorder %s31, 1
        %s512 = scalar_select %p511, %s31, 1
        %p513 = scmp.lt.s32.totalorder %s32, 0
        %s514 = scalar_select %p513, %s32, 0
        %s515 = sadd.s32 %s514, %s512
        %s516 = smul.addr %s515, 4
        %s517 = scalar_lea.vmem %s10, %s516
        %p518 = pneg %p355
        %p519 = pneg %p352
        %s520 = sand.u32 %s342, 1
        %s521 = scalar_lea.sflag [#allocation4], %s520
        %s522 = sand.u32 %s342, 1
        %s523 = smul.addr %s522, 4
        %s524 = scalar_lea.vmem [#allocation3], %s523
        %p525 = scmp.lt.s32.totalorder %s31, 1
        %s526 = scalar_select %p525, %s31, 1
        %p527 = scmp.lt.s32.totalorder %s32, 0
        %s528 = scalar_select %p527, %s32, 0
        %s529 = sadd.s32 %s528, %s526
        %s530 = smul.addr %s529, 4
        %s531 = scalar_lea.vmem %s0, %s530
        %p532 = scmp.lt.s32.totalorder %s31, 1
        %s533 = scalar_select %p532, %s31, 1
        %s534 = smul.addr %s533, 4
        %s535 = scalar_lea.vmem %s1, %s534
        %p536 = scmp.lt.s32.totalorder %s33, 3
        %s537 = scalar_select %p536, %s33, 3
        %s538 = smul.addr %s537, 4
        %s539 = smul.addr %s538, 4
        %s540 = scalar_lea.vmem %s2, %s539
        %p541 = scmp.lt.s32.totalorder %s33, 3
        %s542 = scalar_select %p541, %s33, 3
        %s543 = smul.addr %s542, 4
        %s544 = smul.addr %s543, 4
        %s545 = scalar_lea.vmem %s3, %s544
        %p546 = scmp.lt.s32.totalorder %s33, 3
        %s547 = scalar_select %p546, %s33, 3
        %s548 = smul.addr %s547, 4
        %s549 = smul.addr %s548, 4
        %s550 = scalar_lea.vmem %s4, %s549
        %p551 = scmp.lt.s32.totalorder %s33, 3
        %s552 = scalar_select %p551, %s33, 3
        %s553 = scalar_lea.vmem %s5, %s552
        %p554 = scmp.lt.s32.totalorder %s33, 3
        %s555 = scalar_select %p554, %s33, 3
        %s556 = scalar_lea.vmem %s6, %s555
        %p557 = scmp.lt.s32.totalorder %s33, 3
        %s558 = scalar_select %p557, %s33, 3
        %s559 = scalar_lea.vmem %s7, %s558
        %p560 = scmp.lt.s32.totalorder %s33, 3
        %s561 = scalar_select %p560, %s33, 3
        %s562 = smul.addr %s561, 4
        %s563 = scalar_lea.vmem %s8, %s562
        %p564 = scmp.lt.s32.totalorder %s31, 1
        %s565 = scalar_select %p564, %s31, 1
        %p566 = scmp.lt.s32.totalorder %s32, 0
        %s567 = scalar_select %p566, %s32, 0
        %s568 = sadd.s32 %s567, %s565
        %s569 = smul.addr %s568, 4
        %s570 = scalar_lea.vmem %s10, %s569
        %p572 = scmp.eq.s32.totalorder %s33, 0
        // Predicated region
        $region61: #{encoder_layer_forward.2} parent=59 // pred_check
          %p573 = pneg %p572
        $region62: #{encoder_layer_forward.2} parent=59 // pred_check_branch
          %575 = sbr.rel (%p573) target = $region64
        $region63: #{encoder_layer_forward.2} parent=59 // pred_region
          %vm576 = vcmask 261120
          %577 = vst.msk [vmem:[#allocation2] sm:$0xff] %vm576, 0.0
        $region64: #{encoder_layer_forward.2} parent=59 // pred_fallthru
          _
        %v578 = vld [vmem:[%s531] sm:$0xf]
        %v579 = vld [vmem:[%s535] sm:$0xf]
        %v580 = vld [vmem:[%s540] sm:$0xf]
        %v581 = vld [vmem:[%s540 + $0x4] sm:$0xf]
        %v582 = vld [vmem:[%s540 + $0x8] sm:$0xf]
        %v583 = vld [vmem:[%s540 + $0xc] sm:$0xf]
        %v584 = vld [vmem:[%s553] sm:$0x1]
        %v586 = vperm.slane %v584, 0
        %v592 = vunpack.c.l.b16 %v580
        %v593 = vunpack.c.l.b16 %v581
        %v594 = vunpack.c.l.b16 %v582
        %v595 = vunpack.c.l.b16 %v583
        %v596 = vpack.c.b16 %v593, %v592
        %v597 = vpack.c.b16 %v595, %v594
        %vm600 = vcmask 261120
        %v602 = vsel %vm600, %v578, 0
        %604 = vmatpush.bf16.msra.mxu0 0
        %605 = vmatpush.bf16.msra.mxu0 0
        %606 = vmatpush.bf16.msra.mxu0 0
        %607 = vmatpush.bf16.msra.mxu0 0
        %608 = vmatpush.bf16.msra.mxu0 0
        %609 = vmatpush.bf16.msra.mxu0 0
        %610 = vmatpush.bf16.msra.mxu0 %v597
        %611 = vmatpush.bf16.msra.mxu0 %v596
        %612 = vmatmul.bf16.gmra.mxu0 %v602
        %v613 = vpop.f32.mrf.mxu0
        %v614 = vadd.f32 %v586, %v613
        %v615 = vpop.f32.mrf.mxu0
        %616 = vdwg.mxu0
        %v617 = vpack.c.bf16 %v614, %v614
        %v618 = vld [vmem:[%s545] sm:$0xf]
        %v619 = vld [vmem:[%s545 + $0x4] sm:$0xf]
        %v620 = vld [vmem:[%s545 + $0x8] sm:$0xf]
        %v621 = vld [vmem:[%s545 + $0xc] sm:$0xf]
        %v622 = vld [vmem:[%s556] sm:$0x1]
        %v624 = vperm.slane %v622, 0
        %v630 = vunpack.c.l.b16 %v618
        %v631 = vunpack.c.l.b16 %v619
        %v632 = vunpack.c.l.b16 %v620
        %v633 = vunpack.c.l.b16 %v621
        %v634 = vpack.c.b16 %v631, %v630
        %v635 = vpack.c.b16 %v633, %v632
        %v639 = vsel %vm600, %v579, 0
        %641 = vmatpush.bf16.msra.mxu0 0
        %642 = vmatpush.bf16.msra.mxu0 0
        %643 = vmatpush.bf16.msra.mxu0 0
        %644 = vmatpush.bf16.msra.mxu0 0
        %645 = vmatpush.bf16.msra.mxu0 0
        %646 = vmatpush.bf16.msra.mxu0 0
        %647 = vmatpush.bf16.msra.mxu0 %v635
        %648 = vmatpush.bf16.msra.mxu0 %v634
        %649 = vmatmul.bf16.gmra.mxu0 %v639
        %v650 = vpop.f32.mrf.mxu0
        %v651 = vadd.f32 %v624, %v650
        %v652 = vpop.f32.mrf.mxu0
        %653 = vdwg.mxu0
        %v654 = vpack.c.bf16 %v651, %v651
        %v655 = vld [vmem:[%s550] sm:$0xf]
        %v656 = vld [vmem:[%s550 + $0x4] sm:$0xf]
        %v657 = vld [vmem:[%s550 + $0x8] sm:$0xf]
        %v658 = vld [vmem:[%s550 + $0xc] sm:$0xf]
        %v659 = vld [vmem:[%s559] sm:$0x1]
        %v661 = vperm.slane %v659, 0
        %v667 = vunpack.c.l.b16 %v655
        %v668 = vunpack.c.l.b16 %v656
        %v669 = vunpack.c.l.b16 %v657
        %v670 = vunpack.c.l.b16 %v658
        %v671 = vpack.c.b16 %v668, %v667
        %v672 = vpack.c.b16 %v670, %v669
        %675 = vmatpush.bf16.msra.mxu0 0
        %676 = vmatpush.bf16.msra.mxu0 0
        %677 = vmatpush.bf16.msra.mxu0 0
        %678 = vmatpush.bf16.msra.mxu0 0
        %679 = vmatpush.bf16.msra.mxu0 0
        %680 = vmatpush.bf16.msra.mxu0 0
        %681 = vmatpush.bf16.msra.mxu0 %v672
        %682 = vmatpush.bf16.msra.mxu0 %v671
        %683 = vmatmul.bf16.gmra.mxu0 %v639
        %v684 = vpop.f32.mrf.mxu0
        %v685 = vadd.f32 %v661, %v684
        %v686 = vpop.f32.mrf.mxu0
        %687 = vdwg.mxu0
        %v688 = vpack.c.bf16 %v685, %v685
        %vm689 = vcmask 64512
        %v691 = vsel %vm689, %v617, 0
        %v694 = vsel %vm689, %v654, 0
        %696 = vmatpush.bf16.xpose.msra.mxu0 0
        %697 = vmatpush.bf16.xpose.msra.mxu0 0
        %698 = vmatpush.bf16.xpose.msra.mxu0 0
        %699 = vmatpush.bf16.xpose.msra.mxu0 0
        %700 = vmatpush.bf16.xpose.msra.mxu0 0
        %701 = vmatpush.bf16.xpose.msra.mxu0 0
        %702 = vmatpush.bf16.xpose.msra.mxu0 0
        %703 = vmatpush.bf16.xpose.msra.mxu0 %v694
        %704 = vmatmul.bf16.gmra.mxu0 %v691
        %v705 = vpop.f32.mrf.mxu0
        %v706 = vadd.f32 0.0, %v705
        %v707 = vpop.f32.mrf.mxu0
        %708 = vdwg.mxu0
        %v709 = vmul.f32 %v706, 0.35355338
        %v710 = vsel %vm689, %v709, -inf
        %711 = vmax.xlane.f32.xlu0 %v710
        %v712 = vpop.xlane.xlu0 %711
        %v713 = vsub.f32 %v709, %v712
        %v714 = vmul.f32 %v713, 1.442695
        %v715 = vpow.pop %v714
        %v716 = vsel %vm689, %v715, 0.0
        %717 = vadd.xlane.f32.xlu0 %v716
        %v718 = vpop.xlane.xlu0 %717
        %v719 = vrcp.pop %v718
        %v720 = vmul.f32 %v718, %v719
        %v721 = vsub.f32 1.0, %v720
        %v722 = vmul.f32 %v719, %v721
        %v723 = vadd.f32 %v719, %v722
        %vm724 = vweird.f32 %v718
        %vm725 = vweird.f32 %v719
        %vm726 = vmor %vm724, %vm725
        %v727 = vsel %vm726, %v719, %v723
        %v728 = vand.u32 2147483647, %v718
        %vm729 = vcmp.eq.f32.partialorder %v728, 8.507059e+37
        %v730 = vand.u32 %v718, 2147483648
        %v731 = vor.u32 1.1754944e-38, %v730
        %v732 = vsel %vm729, %v731, %v727
        %v733 = vmul.f32 %v715, %v732
        %v734 = vpack.c.bf16 %v733, %v733
        %vm735 = vcmask 60416
        %736 = vst.msk [vmem:[%s524] sm:$0xf] %vm735, %v734
        %v738 = vsel %vm689, %v734, 0
        %vm740 = vcmask 1043456
        %v742 = vsel %vm740, %v688, 0
        %744 = vmatpush.bf16.msra.mxu0 0
        %745 = vmatpush.bf16.msra.mxu0 0
        %746 = vmatpush.bf16.msra.mxu0 0
        %747 = vmatpush.bf16.msra.mxu0 0
        %748 = vmatpush.bf16.msra.mxu0 0
        %749 = vmatpush.bf16.msra.mxu0 0
        %750 = vmatpush.bf16.msra.mxu0 0
        %751 = vmatpush.bf16.msra.mxu0 %v742
        %752 = vmatmul.bf16.gmra.mxu0 %v738
        %v753 = vpop.f32.mrf.mxu0
        %v754 = vadd.f32 0.0, %v753
        %v755 = vpop.f32.mrf.mxu0
        %756 = vdwg.mxu0
        %v757 = vld [vmem:[#allocation2] sm:$0xff]
        %v758 = vpack.c.bf16 %v754, %v754
        %v759 = vld [vmem:[%s563] sm:$0xf]
        %v761 = vsel %vm689, %v758, 0
        %v764 = vsel %vm740, %v759, 0
        %766 = vmatpush.bf16.msra.mxu0 0
        %767 = vmatpush.bf16.msra.mxu0 0
        %768 = vmatpush.bf16.msra.mxu0 0
        %769 = vmatpush.bf16.msra.mxu0 0
        %770 = vmatpush.bf16.msra.mxu0 0
        %771 = vmatpush.bf16.msra.mxu0 0
        %772 = vmatpush.bf16.msra.mxu0 0
        %773 = vmatpush.bf16.msra.mxu0 %v764
        %774 = vmatmul.bf16.gmra.mxu0 %v761
        %v775 = vpop.f32.mrf.mxu0
        %v776 = vadd.f32 0.0, %v775
        %v777 = vpop.f32.mrf.mxu0
        %778 = vdwg.mxu0
        %v779 = vadd.f32 %v757, %v776
        %780 = vst.msk [vmem:[#allocation2] sm:$0xff] %vm600, %v779
        %p781 = scmp.eq.s32.totalorder %s33, 3
        // Predicated region
        $region65: #{encoder_layer_forward.2} parent=59 // pred_check
          %p782 = pneg %p781
        $region66: #{encoder_layer_forward.2} parent=59 // pred_check_branch
          %784 = sbr.rel (%p782) target = $region68
        $region67: #{encoder_layer_forward.2} parent=59 // pred_region
          %v785 = vld [vmem:[#allocation2] sm:$0xff]
          %v786 = vld [vmem:[%s9] sm:$0x1]
          %v788 = vperm.slane %v786, 0
          %v790 = vadd.f32 %v785, %v788
          %v791 = vpack.c.bf16 %v790, %v790
          %vm792 = vcmask 257024
          %793 = vst.msk [vmem:[%s570] sm:$0xf] %vm792, %v791
        $region68: #{encoder_layer_forward.2} parent=59 // pred_fallthru
          _
        %p794 = scmp.lt.s32.totalorder %s31, 1
        %s795 = scalar_select %p794, %s31, 1
        %p796 = scmp.lt.s32.totalorder %s32, 0
        %s797 = scalar_select %p796, %s32, 0
        %s798 = sadd.s32 %s797, %s795
        %s799 = smul.addr %s798, 4
        %s800 = scalar_lea.vmem %s10, %s799
        %s801 = sand.u32 %s342, 1
        %s802 = scalar_lea.sflag [#allocation4], %s801
        %s803 = sand.u32 %s342, 1
        %s804 = smul.addr %s803, 4
        %s805 = scalar_lea.vmem [#allocation3], %s804
        // Predicated region
        $region69: #{encoder_layer_forward.2} parent=59 // pred_check
          %p806 = pneg %p322
        $region70: #{encoder_layer_forward.2} parent=59 // pred_check_branch
          %808 = sbr.rel (%p806) target = $region72
        $region71: #{encoder_layer_forward.2} parent=59 // pred_region
          _
        $region72: #{encoder_layer_forward.2} parent=59 // pred_fallthru
          _
        // Predicated region
        $region73: #{encoder_layer_forward.2} parent=59 // pred_check
          %p809 = pneg %p352
        $region74: #{encoder_layer_forward.2} parent=59 // pred_check_branch
          %811 = sbr.rel (%p809) target = $region76
        $region75: #{encoder_layer_forward.2} parent=59 // pred_region
          %813 = vsyncadd %s802, 0
          %s814 = sadd.s32 %s32, %s33
          %s815 = smul.addr %s31, 4
          %s816 = sadd.s32 %s814, %s815
          %s817 = smul.addr %s816, 4
          %s818 = scalar_lea.hbm %s11, %s817
          %s820 = sshll.u32 %s805, 4
          %s821 = int_to_ptr.vmem [resolvable:$true] %s820
          %s822 = sshll.u32 %s818, 4
          %s823 = int_to_ptr.hbm [resolvable:$true] %s822
          %825 = dma.vmem_to_hbm [thread:$0]  %s821, 64, %s823, %s802
        $region76: #{encoder_layer_forward.2} parent=59 // pred_fallthru
          _
      $region60: #{encoder_layer_forward.2} parent=5 // pred_fallthru
        _
      %p826 = scmp.le.s32.totalorder 2, %s21
      // Predicated region
      $region77: #{encoder_layer_forward.2} parent=5 // pred_check
        %p827 = pneg %p826
      $region78: #{encoder_layer_forward.2} parent=5 // pred_check_branch
        %829 = sbr.rel (%p827) target = $region80
      $region79: #{encoder_layer_forward.2} parent=5 // pred_region
        %s830 = ssub.s32 %s21, 2
        // Predicated region
        $region81: #{encoder_layer_forward.2} parent=79 // pred_check
          %p831 = pneg %p328
        $region82: #{encoder_layer_forward.2} parent=79 // pred_check_branch
          %833 = sbr.rel (%p831) target = $region84
        $region83: #{encoder_layer_forward.2} parent=79 // pred_region
          %p834 = scmp.lt.s32.totalorder %s34, 1
          %s835 = scalar_select %p834, %s34, 1
          %p836 = scmp.lt.s32.totalorder %s35, 0
          %s837 = scalar_select %p836, %s35, 0
          %s838 = sadd.s32 %s837, %s835
          %s839 = smul.addr %s838, 4
          %s840 = scalar_lea.vmem %s10, %s839
        $region84: #{encoder_layer_forward.2} parent=79 // pred_fallthru
          _
        // Predicated region
        $region85: #{encoder_layer_forward.2} parent=79 // pred_check
          %p841 = pneg %p358
        $region86: #{encoder_layer_forward.2} parent=79 // pred_check_branch
          %843 = sbr.rel (%p841) target = $region88
        $region87: #{encoder_layer_forward.2} parent=79 // pred_region
          %s844 = sand.u32 %s343, 1
          %s845 = scalar_lea.sflag [#allocation4], %s844
          %s846 = sand.u32 %s343, 1
          %s847 = smul.addr %s846, 4
          %s848 = scalar_lea.vmem [#allocation3], %s847
          %850 = dma.done %s845, 64
        $region88: #{encoder_layer_forward.2} parent=79 // pred_fallthru
          _
      $region80: #{encoder_layer_forward.2} parent=5 // pred_fallthru
        _
    $region6: #{encoder_layer_forward.2} parent=1 // loop_footer
      %s25 = sadd.s32 1, %s21
    $region7: #{encoder_layer_forward.2} parent=1 // loop_footer_branch
      %20 = sbr.rel target = $region3
    $region8: #{encoder_layer_forward.2} parent=1 // loop_exit
      _
    %851 = vsyncpa [#allocation4], 1
    %s852 = scalar_lea.sflag [#allocation4], 1
    %853 = vsyncpa %s852, 1

</llo_original>
